<compile_context>
chip_gen: v7x
topology: tpu7x:2x2x1
jax: 0.10.0
libtpu: 0.0.40
codegen_flags: <defaults>
</compile_context>

<pallas_src>
import numpy as np
import jax
import jax.numpy as jnp
from jax.experimental import pallas as pl
from jax.experimental.pallas import tpu as pltpu


# --------------------------------------------------------------------------
# Fused kernel: one batch element per grid step.
#   q, k, v, a refs: (1, H, N, D)   ->  o ref: (1, H, N, D)
# softmax(dim=-3) of the 4-D PyTorch tensors == softmax over the head axis,
# which is axis 0 of the (H, N, N) score slabs handled here.
# --------------------------------------------------------------------------
def _agent_attention_kernel(q_ref, k_ref, v_ref, a_ref, o_ref):
    q = q_ref[0]                                   # (H, N, D)
    k = k_ref[0]
    v = v_ref[0]
    a = a_ref[0]
    scale = q.shape[-1] ** -0.5                    # static python float

    # K = softmax_H( q @ a^T * scale )             (H, N, M)
    k_sc = jnp.einsum("hnd,hmd->hnm", q, a,
                      preferred_element_type=jnp.float32) * scale
    k_sc = k_sc - jnp.max(k_sc, axis=0, keepdims=True)
    k_exp = jnp.exp(k_sc)
    k_att = k_exp * pl.reciprocal(jnp.sum(k_exp, axis=0, keepdims=True),
                                  approx=True)

    # Q = softmax_H( a @ k^T * scale )             (H, M, N)
    q_sc = jnp.einsum("hmd,hnd->hmn", a, k,
                      preferred_element_type=jnp.float32) * scale
    q_sc = q_sc - jnp.max(q_sc, axis=0, keepdims=True)
    q_exp = jnp.exp(q_sc)
    q_att = q_exp * jnp.broadcast_to(
        pl.reciprocal(jnp.sum(q_exp, axis=0, keepdims=True), approx=True),
        q_exp.shape)

    # A = Q @ (K @ V)   (module semantics require M == N)
    kv = jnp.einsum("hnm,hmd->hnd", k_att, v,
                    preferred_element_type=jnp.float32)        # (H, N, D)
    out = jnp.einsum("hmn,hnd->hmd", q_att, kv,
                     preferred_element_type=jnp.float32)       # (H, N, D)
    o_ref[0] = out.astype(o_ref.dtype)


def agent_attention(q, k, v, a):
    """q, k, v: (B, H, N, D); a: (B, H, M, D) with M == N (required by the
    reference module's matmul(K, V)). Returns (B, H, N, D)."""
    B, H, N, D = q.shape
    M = a.shape[2]
    assert M == N, "AgentAttention's matmul(K, V) requires n_agents == seq_len"

    spec = pl.BlockSpec((1, H, N, D), lambda b: (b, 0, 0, 0))
    return pl.pallas_call(
        _agent_attention_kernel,
        out_shape=jax.ShapeDtypeStruct((B, H, N, D), q.dtype),
        grid=(B,),
        in_specs=[spec, spec, spec, spec],
        out_specs=spec,
        compiler_params=pltpu.CompilerParams(
            dimension_semantics=("parallel",)),
    )(q, k, v, a)


# --------------------------------------------------------------------------
# Pure-JAX reference (eval mode: dropout = identity) for correctness check.
# --------------------------------------------------------------------------
def agent_attention_ref(q, k, v, a):
    scale = q.shape[-1] ** -0.5
    K = jnp.einsum("bhnd,bhmd->bhnm", q, a) * scale
    K = jax.nn.softmax(K, axis=-3)
    Q = jnp.einsum("bhmd,bhnd->bhmn", a, k) * scale
    Q = jax.nn.softmax(Q, axis=-3)
    return jnp.matmul(Q, jnp.matmul(K, v))


if __name__ == "__main__":
    B, H, N, D = 2, 4, 16, 32

    key = jax.random.PRNGKey(0)
    kq, kk, kv, ka = jax.random.split(key, 4)
    q = jax.random.normal(kq, (B, H, N, D), jnp.float32)
    k = jax.random.normal(kk, (B, H, N, D), jnp.float32)
    v = jax.random.normal(kv, (B, H, N, D), jnp.float32)
    a = jax.random.normal(ka, (B, H, N, D), jnp.float32)   # agent tokens, M == N

    out = agent_attention(q, k, v, a)
    jax.block_until_ready(out)
    assert out.shape == (B, H, N, D)

    ref = agent_attention_ref(q, k, v, a)
    np.testing.assert_allclose(np.asarray(out), np.asarray(ref),
                               rtol=2e-2, atol=2e-2)
    print("KERNEL_OK")
</pallas_src>

<mosaic_0001>
module attributes {stable_mosaic.version = 11 : i64} {
  func.func @_agent_attention_kernel(%arg0: i32, %arg1: memref<1x4x16x32xf32, #tpu.memory_space<vmem>>, %arg2: memref<1x4x16x32xf32, #tpu.memory_space<vmem>>, %arg3: memref<1x4x16x32xf32, #tpu.memory_space<vmem>>, %arg4: memref<1x4x16x32xf32, #tpu.memory_space<vmem>>, %arg5: memref<1x4x16x32xf32, #tpu.memory_space<vmem>>) attributes {dimension_semantics = [#tpu.dimension_semantics<parallel>], iteration_bounds = array<i64: 2>, scalar_prefetch = 0 : i64, scratch_operands = 0 : i64, tpu.core_type = #tpu.core_type<tc>, window_params = [{transform_indices = @transform_0, window_bounds = array<i64: 1, 4, 16, 32>}, {transform_indices = @transform_1, window_bounds = array<i64: 1, 4, 16, 32>}, {transform_indices = @transform_2, window_bounds = array<i64: 1, 4, 16, 32>}, {transform_indices = @transform_3, window_bounds = array<i64: 1, 4, 16, 32>}, {transform_indices = @transform_4, window_bounds = array<i64: 1, 4, 16, 32>}]} {
    %c0 = arith.constant 0 : index
    %c0_0 = arith.constant 0 : index
    %c0_1 = arith.constant 0 : index
    %c0_2 = arith.constant 0 : index
    %0 = vector.load %arg1[%c0, %c0_0, %c0_1, %c0_2] : memref<1x4x16x32xf32, #tpu.memory_space<vmem>>, vector<1x4x16x32xf32>
    %1 = vector.shape_cast %0 : vector<1x4x16x32xf32> to vector<4x16x32xf32>
    %c0_3 = arith.constant 0 : index
    %c0_4 = arith.constant 0 : index
    %c0_5 = arith.constant 0 : index
    %c0_6 = arith.constant 0 : index
    %2 = vector.load %arg2[%c0_3, %c0_4, %c0_5, %c0_6] : memref<1x4x16x32xf32, #tpu.memory_space<vmem>>, vector<1x4x16x32xf32>
    %3 = vector.shape_cast %2 : vector<1x4x16x32xf32> to vector<4x16x32xf32>
    %c0_7 = arith.constant 0 : index
    %c0_8 = arith.constant 0 : index
    %c0_9 = arith.constant 0 : index
    %c0_10 = arith.constant 0 : index
    %4 = vector.load %arg3[%c0_7, %c0_8, %c0_9, %c0_10] : memref<1x4x16x32xf32, #tpu.memory_space<vmem>>, vector<1x4x16x32xf32>
    %5 = vector.shape_cast %4 : vector<1x4x16x32xf32> to vector<4x16x32xf32>
    %c0_11 = arith.constant 0 : index
    %c0_12 = arith.constant 0 : index
    %c0_13 = arith.constant 0 : index
    %c0_14 = arith.constant 0 : index
    %6 = vector.load %arg4[%c0_11, %c0_12, %c0_13, %c0_14] : memref<1x4x16x32xf32, #tpu.memory_space<vmem>>, vector<1x4x16x32xf32>
    %7 = vector.shape_cast %6 : vector<1x4x16x32xf32> to vector<4x16x32xf32>
    "tpu.trace_start"() <{level = 10 : i32, message = "hnd,hmd->hnm"}> : () -> ()
    %cst = arith.constant dense<0.000000e+00> : vector<4x16x16xf32>
    %8 = tpu.matmul %1, %7, %cst {dimension_numbers = #tpu.dot_dimension_numbers<[2], [2], [1], [1], [0, 0, 0, 1, 1, 1], [0], [0]>} : vector<4x16x32xf32>, vector<4x16x32xf32>, vector<4x16x16xf32> -> vector<4x16x16xf32>
    "tpu.trace_stop"() : () -> ()
    %cst_15 = arith.constant 0.176776692 : f32
    %9 = vector.broadcast %cst_15 : f32 to vector<4x16x16xf32>
    %10 = arith.mulf %8, %9 : vector<4x16x16xf32>
    %cst_16 = arith.constant dense<0xFF800000> : vector<16x16xf32>
    %11 = vector.multi_reduction <maximumf>, %10, %cst_16 [0] : vector<4x16x16xf32> to vector<16x16xf32>
    %12 = vector.shape_cast %11 : vector<16x16xf32> to vector<1x16x16xf32>
    %13 = vector.broadcast %12 : vector<1x16x16xf32> to vector<4x16x16xf32>
    %14 = arith.subf %10, %13 : vector<4x16x16xf32>
    %15 = math.exp %14 : vector<4x16x16xf32>
    %cst_17 = arith.constant dense<0.000000e+00> : vector<16x16xf32>
    %16 = vector.multi_reduction <add>, %15, %cst_17 [0] : vector<4x16x16xf32> to vector<16x16xf32>
    %17 = vector.shape_cast %16 : vector<16x16xf32> to vector<1x16x16xf32>
    %18 = tpu.reciprocal %17 {approx = true} : vector<1x16x16xf32> -> vector<1x16x16xf32>
    %19 = vector.broadcast %18 : vector<1x16x16xf32> to vector<4x16x16xf32>
    %20 = arith.mulf %15, %19 : vector<4x16x16xf32>
    "tpu.trace_start"() <{level = 10 : i32, message = "hmd,hnd->hmn"}> : () -> ()
    %cst_18 = arith.constant dense<0.000000e+00> : vector<4x16x16xf32>
    %21 = tpu.matmul %7, %3, %cst_18 {dimension_numbers = #tpu.dot_dimension_numbers<[2], [2], [1], [1], [0, 0, 0, 1, 1, 1], [0], [0]>} : vector<4x16x32xf32>, vector<4x16x32xf32>, vector<4x16x16xf32> -> vector<4x16x16xf32>
    "tpu.trace_stop"() : () -> ()
    %cst_19 = arith.constant 0.176776692 : f32
    %22 = vector.broadcast %cst_19 : f32 to vector<4x16x16xf32>
    %23 = arith.mulf %21, %22 : vector<4x16x16xf32>
    %cst_20 = arith.constant dense<0xFF800000> : vector<16x16xf32>
    %24 = vector.multi_reduction <maximumf>, %23, %cst_20 [0] : vector<4x16x16xf32> to vector<16x16xf32>
    %25 = vector.shape_cast %24 : vector<16x16xf32> to vector<1x16x16xf32>
    %26 = vector.broadcast %25 : vector<1x16x16xf32> to vector<4x16x16xf32>
    %27 = arith.subf %23, %26 : vector<4x16x16xf32>
    %28 = math.exp %27 : vector<4x16x16xf32>
    %cst_21 = arith.constant dense<0.000000e+00> : vector<16x16xf32>
    %29 = vector.multi_reduction <add>, %28, %cst_21 [0] : vector<4x16x16xf32> to vector<16x16xf32>
    %30 = vector.shape_cast %29 : vector<16x16xf32> to vector<1x16x16xf32>
    %31 = tpu.reciprocal %30 {approx = true} : vector<1x16x16xf32> -> vector<1x16x16xf32>
    %32 = vector.shape_cast %31 : vector<1x16x16xf32> to vector<1x16x16xf32>
    %33 = vector.broadcast %32 : vector<1x16x16xf32> to vector<4x16x16xf32>
    %34 = arith.mulf %28, %33 : vector<4x16x16xf32>
    "tpu.trace_start"() <{level = 10 : i32, message = "hnm,hmd->hnd"}> : () -> ()
    %cst_22 = arith.constant dense<0.000000e+00> : vector<4x16x32xf32>
    %35 = tpu.matmul %20, %5, %cst_22 {dimension_numbers = #tpu.dot_dimension_numbers<[2], [1], [1], [2], [0, 0, 0, 1, 1, 2], [0], [0]>} : vector<4x16x16xf32>, vector<4x16x32xf32>, vector<4x16x32xf32> -> vector<4x16x32xf32>
    "tpu.trace_stop"() : () -> ()
    "tpu.trace_start"() <{level = 10 : i32, message = "hmn,hnd->hmd"}> : () -> ()
    %cst_23 = arith.constant dense<0.000000e+00> : vector<4x16x32xf32>
    %36 = tpu.matmul %34, %35, %cst_23 {dimension_numbers = #tpu.dot_dimension_numbers<[2], [1], [1], [2], [0, 0, 0, 1, 1, 2], [0], [0]>} : vector<4x16x16xf32>, vector<4x16x32xf32>, vector<4x16x32xf32> -> vector<4x16x32xf32>
    "tpu.trace_stop"() : () -> ()
    %c0_24 = arith.constant 0 : index
    %c0_25 = arith.constant 0 : index
    %c0_26 = arith.constant 0 : index
    %c0_27 = arith.constant 0 : index
    %37 = vector.load %arg5[%c0_24, %c0_25, %c0_26, %c0_27] : memref<1x4x16x32xf32, #tpu.memory_space<vmem>>, vector<1x4x16x32xf32>
    %38 = vector.shape_cast %37 : vector<1x4x16x32xf32> to vector<4x16x32xf32>
    %39 = vector.shape_cast %36 : vector<4x16x32xf32> to vector<1x4x16x32xf32>
    tpu.vector_store %arg5[%c0_24, %c0_25, %c0_26, %c0_27], %39 {strides = array<i32>} : memref<1x4x16x32xf32, #tpu.memory_space<vmem>>, vector<1x4x16x32xf32>,
    return
  }
  func.func @transform_0(%arg0: i32) -> (i32, i32, i32, i32) {
    %c0_i32 = arith.constant 0 : i32
    %c0_i32_0 = arith.constant 0 : i32
    %c0_i32_1 = arith.constant 0 : i32
    %c0_i32_2 = arith.constant 0 : i32
    return %arg0, %c0_i32, %c0_i32_0, %c0_i32_1 : i32, i32, i32, i32
  }
  func.func @transform_1(%arg0: i32) -> (i32, i32, i32, i32) {
    %c0_i32 = arith.constant 0 : i32
    %c0_i32_0 = arith.constant 0 : i32
    %c0_i32_1 = arith.constant 0 : i32
    %c0_i32_2 = arith.constant 0 : i32
    return %arg0, %c0_i32, %c0_i32_0, %c0_i32_1 : i32, i32, i32, i32
  }
  func.func @transform_2(%arg0: i32) -> (i32, i32, i32, i32) {
    %c0_i32 = arith.constant 0 : i32
    %c0_i32_0 = arith.constant 0 : i32
    %c0_i32_1 = arith.constant 0 : i32
    %c0_i32_2 = arith.constant 0 : i32
    return %arg0, %c0_i32, %c0_i32_0, %c0_i32_1 : i32, i32, i32, i32
  }
  func.func @transform_3(%arg0: i32) -> (i32, i32, i32, i32) {
    %c0_i32 = arith.constant 0 : i32
    %c0_i32_0 = arith.constant 0 : i32
    %c0_i32_1 = arith.constant 0 : i32
    %c0_i32_2 = arith.constant 0 : i32
    return %arg0, %c0_i32, %c0_i32_0, %c0_i32_1 : i32, i32, i32, i32
  }
  func.func @transform_4(%arg0: i32) -> (i32, i32, i32, i32) {
    %c0_i32 = arith.constant 0 : i32
    %c0_i32_0 = arith.constant 0 : i32
    %c0_i32_1 = arith.constant 0 : i32
    %c0_i32_2 = arith.constant 0 : i32
    return %arg0, %c0_i32, %c0_i32_0, %c0_i32_1 : i32, i32, i32, i32
  }
}

</mosaic_0001>

<llo_original>
// kernel: tpu_custom_call.1
$region0: #{tpu_custom_call.1}
  #allocation0 [shape = 'u32[]', space=smem, size = 0x4, offset = 0x4, fixed_abs, tag = 'smem constant byte address 0x4 - core index']
  #allocation1 [shape = 'u32[144,128]{1,0:T(1,128)}', space=vmem, size = 0x12000, scoped, tag = 'internal scratch']
  %s0 = inlined_call_operand.hbm [shape: f32[2,4,16,32], index: 0, kind: input, shape index: {}]
  %s1 = inlined_call_operand.hbm [shape: f32[2,4,16,32], index: 1, kind: input, shape index: {}]
  %s2 = inlined_call_operand.hbm [shape: f32[2,4,16,32], index: 2, kind: input, shape index: {}]
  %s3 = inlined_call_operand.hbm [shape: f32[2,4,16,32], index: 3, kind: input, shape index: {}]
  %s4 = inlined_call_operand.hbm [shape: f32[2,4,16,32], index: 4, kind: output, shape index: {}]
  %s5 = sld [smem:[#allocation0]]
  $region65: #{tpu_custom_call.1} parent=0
    _
  %s7 = ssub.s32 1, %s5
  %s8 = scalar_select 0, %s7, %s5
  $region1: #{tpu_custom_call.1} parent=0
    #allocation2 [shape = 'u8[65536]{0}', space=vmem, size = 0x10000, scoped, tag = 'input window, operand 0']
    #allocation3 [shape = 's32[2]{0}', space=sflag, size = 0x8, scoped, tag = 'scoped memory for tpu_custom_call.1']
    #allocation4 [shape = 's32[2]{0}', space=sflag, size = 0x8, scoped, tag = 'scoped memory for tpu_custom_call.1']
    #allocation5 [shape = 'u8[65536]{0}', space=vmem, size = 0x10000, scoped, tag = 'input window, operand 1']
    #allocation6 [shape = 's32[2]{0}', space=sflag, size = 0x8, scoped, tag = 'scoped memory for tpu_custom_call.1']
    #allocation7 [shape = 'u8[65536]{0}', space=vmem, size = 0x10000, scoped, tag = 'input window, operand 2']
    #allocation8 [shape = 'u8[65536]{0}', space=vmem, size = 0x10000, scoped, tag = 'input window, operand 3']
    #allocation9 [shape = 's32[2]{0}', space=sflag, size = 0x8, scoped, tag = 'scoped memory for tpu_custom_call.1']
    #allocation10 [shape = 'u8[65536]{0}', space=vmem, size = 0x10000, scoped, tag = 'output window, operand 0']
    %9 = vsyncpa [#allocation3], 0
    %s10 = scalar_lea.sflag [#allocation3], 1
    %11 = vsyncpa %s10, 0
    %12 = vsyncpa [#allocation6], 0
    %s13 = scalar_lea.sflag [#allocation6], 1
    %14 = vsyncpa %s13, 0
    %15 = vsyncpa [#allocation9], 0
    %s16 = scalar_lea.sflag [#allocation9], 1
    %17 = vsyncpa %s16, 0
    %18 = vsyncpa [#allocation4], 0
    %s19 = scalar_lea.sflag [#allocation4], 1
    %20 = vsyncpa %s19, 0
    loop: start=0, step=1, limit=4
    $region2: #{tpu_custom_call.1} parent=1 // loop_pre_header
      _
    $region3: #{tpu_custom_call.1} parent=1 // loop_header
      %s22 = sphi 0, %s26
      %p23 = scmp.ge.s32.totalorder %s22, 4
      %s32 = sphi 0, %s34
      %s35 = sphi 0, %s32
      %s36 = sphi 0, %s35
      %s52 = sphi 0, %s36
      %s58 = sphi 0, %s60
      %s61 = sphi 0, %s58
      %s62 = sphi 0, %s61
      %s78 = sphi 0, %s62
      %s84 = sphi 0, %s86
      %s87 = sphi 0, %s84
      %s88 = sphi 0, %s87
      %s104 = sphi 0, %s88
      %s110 = sphi 0, %s112
      %s113 = sphi 0, %s110
      %s114 = sphi 0, %s113
      %s130 = sphi 0, %s114
      %s136 = sphi 0, %s138
      %s139 = sphi 0, %s136
      %s140 = sphi 0, %s139
      %s156 = sphi 0, %s140
    $region4: #{tpu_custom_call.1} parent=1 // loop_header_branch
      %25 = sbr.rel (%p23) target = $region8
    $region5: #{tpu_custom_call.1} parent=1 // loop_body
      %s27 = ssub.s32 %s22, 1
      %s28 = ssub.s32 %s22, 2
      %s29 = sadd.s32 %s22, 1
      %s30 = ssub.s32 %s22, %s29
      %p31 = scmp.eq.s32.totalorder %s30, 0
      %s33 = sadd.s32 %s32, 1
      %s34 = scalar_select %p31, %s32, %s33
      %p37 = pneg %p31
      %p38 = scmp.eq.s32.totalorder %s22, 1
      %p39 = por %p37, %p38
      %p40 = scmp.ne.s32.totalorder %s32, %s35
      %p41 = scmp.eq.s32.totalorder %s22, 0
      %p42 = por %p40, %p41
      %p43 = scmp.ne.s32.totalorder %s32, %s35
      %p44 = scmp.eq.s32.totalorder %s27, 1
      %p45 = por %p43, %p44
      %p46 = scmp.ne.s32.totalorder %s35, %s36
      %p47 = scmp.eq.s32.totalorder %s27, 0
      %p48 = por %p46, %p47
      %p49 = scmp.ne.s32.totalorder %s35, %s36
      %p50 = scmp.eq.s32.totalorder %s28, 1
      %p51 = por %p49, %p50
      %p53 = scmp.ne.s32.totalorder %s36, %s52
      %p54 = scmp.eq.s32.totalorder %s28, 0
      %p55 = por %p53, %p54
      %s56 = ssub.s32 %s22, %s29
      %p57 = scmp.eq.s32.totalorder %s56, 0
      %s59 = sadd.s32 %s58, 1
      %s60 = scalar_select %p57, %s58, %s59
      %p63 = pneg %p57
      %p64 = scmp.eq.s32.totalorder %s22, 1
      %p65 = por %p63, %p64
      %p66 = scmp.ne.s32.totalorder %s58, %s61
      %p67 = scmp.eq.s32.totalorder %s22, 0
      %p68 = por %p66, %p67
      %p69 = scmp.ne.s32.totalorder %s58, %s61
      %p70 = scmp.eq.s32.totalorder %s27, 1
      %p71 = por %p69, %p70
      %p72 = scmp.ne.s32.totalorder %s61, %s62
      %p73 = scmp.eq.s32.totalorder %s27, 0
      %p74 = por %p72, %p73
      %p75 = scmp.ne.s32.totalorder %s61, %s62
      %p76 = scmp.eq.s32.totalorder %s28, 1
      %p77 = por %p75, %p76
      %p79 = scmp.ne.s32.totalorder %s62, %s78
      %p80 = scmp.eq.s32.totalorder %s28, 0
      %p81 = por %p79, %p80
      %s82 = ssub.s32 %s22, %s29
      %p83 = scmp.eq.s32.totalorder %s82, 0
      %s85 = sadd.s32 %s84, 1
      %s86 = scalar_select %p83, %s84, %s85
      %p89 = pneg %p83
      %p90 = scmp.eq.s32.totalorder %s22, 1
      %p91 = por %p89, %p90
      %p92 = scmp.ne.s32.totalorder %s84, %s87
      %p93 = scmp.eq.s32.totalorder %s22, 0
      %p94 = por %p92, %p93
      %p95 = scmp.ne.s32.totalorder %s84, %s87
      %p96 = scmp.eq.s32.totalorder %s27, 1
      %p97 = por %p95, %p96
      %p98 = scmp.ne.s32.totalorder %s87, %s88
      %p99 = scmp.eq.s32.totalorder %s27, 0
      %p100 = por %p98, %p99
      %p101 = scmp.ne.s32.totalorder %s87, %s88
      %p102 = scmp.eq.s32.totalorder %s28, 1
      %p103 = por %p101, %p102
      %p105 = scmp.ne.s32.totalorder %s88, %s104
      %p106 = scmp.eq.s32.totalorder %s28, 0
      %p107 = por %p105, %p106
      %s108 = ssub.s32 %s22, %s29
      %p109 = scmp.eq.s32.totalorder %s108, 0
      %s111 = sadd.s32 %s110, 1
      %s112 = scalar_select %p109, %s110, %s111
      %p115 = pneg %p109
      %p116 = scmp.eq.s32.totalorder %s22, 1
      %p117 = por %p115, %p116
      %p118 = scmp.ne.s32.totalorder %s110, %s113
      %p119 = scmp.eq.s32.totalorder %s22, 0
      %p120 = por %p118, %p119
      %p121 = scmp.ne.s32.totalorder %s110, %s113
      %p122 = scmp.eq.s32.totalorder %s27, 1
      %p123 = por %p121, %p122
      %p124 = scmp.ne.s32.totalorder %s113, %s114
      %p125 = scmp.eq.s32.totalorder %s27, 0
      %p126 = por %p124, %p125
      %p127 = scmp.ne.s32.totalorder %s113, %s114
      %p128 = scmp.eq.s32.totalorder %s28, 1
      %p129 = por %p127, %p128
      %p131 = scmp.ne.s32.totalorder %s114, %s130
      %p132 = scmp.eq.s32.totalorder %s28, 0
      %p133 = por %p131, %p132
      %s134 = ssub.s32 %s22, %s29
      %p135 = scmp.eq.s32.totalorder %s134, 0
      %s137 = sadd.s32 %s136, 1
      %s138 = scalar_select %p135, %s136, %s137
      %p141 = pneg %p135
      %p142 = scmp.eq.s32.totalorder %s22, 1
      %p143 = por %p141, %p142
      %p144 = scmp.ne.s32.totalorder %s136, %s139
      %p145 = scmp.eq.s32.totalorder %s22, 0
      %p146 = por %p144, %p145
      %p147 = scmp.ne.s32.totalorder %s136, %s139
      %p148 = scmp.eq.s32.totalorder %s27, 1
      %p149 = por %p147, %p148
      %p150 = scmp.ne.s32.totalorder %s139, %s140
      %p151 = scmp.eq.s32.totalorder %s27, 0
      %p152 = por %p150, %p151
      %p153 = scmp.ne.s32.totalorder %s139, %s140
      %p154 = scmp.eq.s32.totalorder %s28, 1
      %p155 = por %p153, %p154
      %p157 = scmp.ne.s32.totalorder %s140, %s156
      %p158 = scmp.eq.s32.totalorder %s28, 0
      %p159 = por %p157, %p158
      %p160 = scmp.le.s32.totalorder 1, %s22
      %p161 = scmp.lt.s32.totalorder %s22, 3
      %p162 = pnand %p160, %p161
      %p163 = pneg %p162
      // Predicated region
      $region9: #{tpu_custom_call.1} parent=5 // pred_check
        _
      $region10: #{tpu_custom_call.1} parent=5 // pred_check_branch
        %165 = sbr.rel (%p162) target = $region12
      $region11: #{tpu_custom_call.1} parent=5 // pred_region
        %s166 = ssub.s32 %s22, 1
      $region12: #{tpu_custom_call.1} parent=5 // pred_fallthru
        _
      %p167 = scmp.lt.s32.totalorder %s22, 2
      // Predicated region
      $region13: #{tpu_custom_call.1} parent=5 // pred_check
        %p168 = pneg %p167
      $region14: #{tpu_custom_call.1} parent=5 // pred_check_branch
        %170 = sbr.rel (%p168) target = $region16
      $region15: #{tpu_custom_call.1} parent=5 // pred_region
        // Predicated region
        $region17: #{tpu_custom_call.1} parent=15 // pred_check
          %p171 = pneg %p42
        $region18: #{tpu_custom_call.1} parent=15 // pred_check_branch
          %173 = sbr.rel (%p171) target = $region20
        $region19: #{tpu_custom_call.1} parent=15 // pred_region
          %s174 = sand.u32 %s32, 1
          %s175 = scalar_lea.sflag [#allocation3], %s174
          %s176 = sand.u32 %s32, 1
          %s177 = smul.addr %s176, 64
          %s178 = scalar_lea.vmem [#allocation2], %s177
          %s180 = ssub.s32 1024, 1024
          %181 = vsyncadd %s175, %s180
          %s182 = smul.addr %s22, 8
          %s183 = smul.addr %s182, 128
          %s184 = scalar_lea.hbm %s0, %s183
          %s185 = sshll.u32 %s178, 4
          %s186 = int_to_ptr.vmem [resolvable:$true] %s185
          %191 = dma.hbm_to_vmem [thread:$0]  %s184, 1024, %s186, %s175, 128, 128, 8
        $region20: #{tpu_custom_call.1} parent=15 // pred_fallthru
          _
        // Predicated region
        $region21: #{tpu_custom_call.1} parent=15 // pred_check
          %p192 = pneg %p68
        $region22: #{tpu_custom_call.1} parent=15 // pred_check_branch
          %194 = sbr.rel (%p192) target = $region24
        $region23: #{tpu_custom_call.1} parent=15 // pred_region
          %s195 = sand.u32 %s22, 1
          %s196 = scalar_lea.sflag [#allocation6], %s195
          %s197 = sand.u32 %s58, 1
          %s198 = smul.addr %s197, 64
          %s199 = scalar_lea.vmem [#allocation5], %s198
          %s201 = ssub.s32 1024, 1024
          %202 = vsyncadd %s196, %s201
          %s203 = smul.addr %s22, 8
          %s204 = smul.addr %s203, 128
          %s205 = scalar_lea.hbm %s1, %s204
          %s206 = sshll.u32 %s199, 4
          %s207 = int_to_ptr.vmem [resolvable:$true] %s206
          %212 = dma.hbm_to_vmem [thread:$0]  %s205, 1024, %s207, %s196, 128, 128, 8
        $region24: #{tpu_custom_call.1} parent=15 // pred_fallthru
          _
        // Predicated region
        $region25: #{tpu_custom_call.1} parent=15 // pred_check
          %p213 = pneg %p94
        $region26: #{tpu_custom_call.1} parent=15 // pred_check_branch
          %215 = sbr.rel (%p213) target = $region28
        $region27: #{tpu_custom_call.1} parent=15 // pred_region
          %s216 = sand.u32 %s22, 1
          %s217 = scalar_lea.sflag [#allocation6], %s216
          %s218 = sand.u32 %s84, 1
          %s219 = smul.addr %s218, 64
          %s220 = scalar_lea.vmem [#allocation7], %s219
          %s222 = ssub.s32 1024, 1024
          %223 = vsyncadd %s217, %s222
          %s224 = smul.addr %s22, 8
          %s225 = smul.addr %s224, 128
          %s226 = scalar_lea.hbm %s2, %s225
          %s227 = sshll.u32 %s220, 4
          %s228 = int_to_ptr.vmem [resolvable:$true] %s227
          %233 = dma.hbm_to_vmem [thread:$0]  %s226, 1024, %s228, %s217, 128, 128, 8
        $region28: #{tpu_custom_call.1} parent=15 // pred_fallthru
          _
        // Predicated region
        $region29: #{tpu_custom_call.1} parent=15 // pred_check
          %p234 = pneg %p120
        $region30: #{tpu_custom_call.1} parent=15 // pred_check_branch
          %236 = sbr.rel (%p234) target = $region32
        $region31: #{tpu_custom_call.1} parent=15 // pred_region
          %s237 = sand.u32 %s110, 1
          %s238 = scalar_lea.sflag [#allocation9], %s237
          %s239 = sand.u32 %s110, 1
          %s240 = smul.addr %s239, 64
          %s241 = scalar_lea.vmem [#allocation8], %s240
          %s243 = ssub.s32 1024, 1024
          %244 = vsyncadd %s238, %s243
          %s245 = smul.addr %s22, 8
          %s246 = smul.addr %s245, 128
          %s247 = scalar_lea.hbm %s3, %s246
          %s248 = sshll.u32 %s241, 4
          %s249 = int_to_ptr.vmem [resolvable:$true] %s248
          %254 = dma.hbm_to_vmem [thread:$0]  %s247, 1024, %s249, %s238, 128, 128, 8
        $region32: #{tpu_custom_call.1} parent=15 // pred_fallthru
          _
      $region16: #{tpu_custom_call.1} parent=5 // pred_fallthru
        _
      %p255 = scmp.le.s32.totalorder 1, %s22
      %p256 = scmp.lt.s32.totalorder %s22, 3
      %p257 = pnand %p255, %p256
      %p258 = pneg %p257
      // Predicated region
      $region33: #{tpu_custom_call.1} parent=5 // pred_check
        _
      $region34: #{tpu_custom_call.1} parent=5 // pred_check_branch
        %260 = sbr.rel (%p257) target = $region36
      $region35: #{tpu_custom_call.1} parent=5 // pred_region
        %s261 = ssub.s32 %s22, 1
        %s262 = sand.u32 %s35, 1
        %s263 = scalar_lea.sflag [#allocation3], %s262
        %s264 = sand.u32 %s35, 1
        %s265 = smul.addr %s264, 64
        %s266 = scalar_lea.vmem [#allocation2], %s265
        // Predicated region
        $region37: #{tpu_custom_call.1} parent=35 // pred_check
          %p267 = pneg %p48
        $region38: #{tpu_custom_call.1} parent=35 // pred_check_branch
          %269 = sbr.rel (%p267) target = $region40
        $region39: #{tpu_custom_call.1} parent=35 // pred_region
          %270 = dma.done %s263, 1024
        $region40: #{tpu_custom_call.1} parent=35 // pred_fallthru
          _
        %s271 = sand.u32 %s27, 1
        %s272 = scalar_lea.sflag [#allocation6], %s271
        %s273 = sand.u32 %s61, 1
        %s274 = smul.addr %s273, 64
        %s275 = scalar_lea.vmem [#allocation5], %s274
        // Predicated region
        $region41: #{tpu_custom_call.1} parent=35 // pred_check
          %p276 = pneg %p74
        $region42: #{tpu_custom_call.1} parent=35 // pred_check_branch
          %278 = sbr.rel (%p276) target = $region44
        $region43: #{tpu_custom_call.1} parent=35 // pred_region
          %279 = dma.done %s272, 1024
        $region44: #{tpu_custom_call.1} parent=35 // pred_fallthru
          _
        %s280 = sand.u32 %s27, 1
        %s281 = scalar_lea.sflag [#allocation6], %s280
        %s282 = sand.u32 %s87, 1
        %s283 = smul.addr %s282, 64
        %s284 = scalar_lea.vmem [#allocation7], %s283
        // Predicated region
        $region45: #{tpu_custom_call.1} parent=35 // pred_check
          %p285 = pneg %p100
        $region46: #{tpu_custom_call.1} parent=35 // pred_check_branch
          %287 = sbr.rel (%p285) target = $region48
        $region47: #{tpu_custom_call.1} parent=35 // pred_region
          %288 = dma.done %s281, 1024
        $region48: #{tpu_custom_call.1} parent=35 // pred_fallthru
          _
        %s289 = sand.u32 %s113, 1
        %s290 = scalar_lea.sflag [#allocation9], %s289
        %s291 = sand.u32 %s113, 1
        %s292 = smul.addr %s291, 64
        %s293 = scalar_lea.vmem [#allocation8], %s292
        // Predicated region
        $region49: #{tpu_custom_call.1} parent=35 // pred_check
          %p294 = pneg %p126
        $region50: #{tpu_custom_call.1} parent=35 // pred_check_branch
          %296 = sbr.rel (%p294) target = $region52
        $region51: #{tpu_custom_call.1} parent=35 // pred_region
          %297 = dma.done %s290, 1024
        $region52: #{tpu_custom_call.1} parent=35 // pred_fallthru
          _
        %s298 = sand.u32 %s35, 1
        %s299 = scalar_lea.sflag [#allocation3], %s298
        %s300 = sand.u32 %s35, 1
        %s301 = smul.addr %s300, 64
        %s302 = scalar_lea.vmem [#allocation2], %s301
        %p303 = pneg %p48
        %p304 = pneg %p45
        %s305 = sand.u32 %s27, 1
        %s306 = scalar_lea.sflag [#allocation6], %s305
        %s307 = sand.u32 %s61, 1
        %s308 = smul.addr %s307, 64
        %s309 = scalar_lea.vmem [#allocation5], %s308
        %p310 = pneg %p74
        %p311 = pneg %p71
        %s312 = sand.u32 %s27, 1
        %s313 = scalar_lea.sflag [#allocation6], %s312
        %s314 = sand.u32 %s87, 1
        %s315 = smul.addr %s314, 64
        %s316 = scalar_lea.vmem [#allocation7], %s315
        %p317 = pneg %p100
        %p318 = pneg %p97
        %s319 = sand.u32 %s113, 1
        %s320 = scalar_lea.sflag [#allocation9], %s319
        %s321 = sand.u32 %s113, 1
        %s322 = smul.addr %s321, 64
        %s323 = scalar_lea.vmem [#allocation8], %s322
        %p324 = pneg %p126
        %p325 = pneg %p123
        %p326 = pneg %p152
        %p327 = pneg %p149
        %s328 = sand.u32 %s139, 1
        %s329 = scalar_lea.sflag [#allocation4], %s328
        %s330 = sand.u32 %s139, 1
        %s331 = smul.addr %s330, 64
        %s332 = scalar_lea.vmem [#allocation10], %s331
        %v333 = vld [vmem:[%s266] sm:$0xff]
        %v334 = vld [vmem:[%s266 + $0x8] sm:$0xff]
        %v335 = vld [vmem:[%s266 + $0x10] sm:$0xff]
        %v336 = vld [vmem:[%s266 + $0x18] sm:$0xff]
        %v337 = vld [vmem:[%s266 + $0x20] sm:$0xff]
        %v338 = vld [vmem:[%s266 + $0x28] sm:$0xff]
        %v339 = vld [vmem:[%s266 + $0x30] sm:$0xff]
        %v340 = vld [vmem:[%s266 + $0x38] sm:$0xff]
        %v341 = vld [vmem:[%s275] sm:$0xff]
        %v342 = vld [vmem:[%s275 + $0x8] sm:$0xff]
        %v343 = vld [vmem:[%s275 + $0x10] sm:$0xff]
        %v344 = vld [vmem:[%s275 + $0x18] sm:$0xff]
        %v345 = vld [vmem:[%s275 + $0x20] sm:$0xff]
        %v346 = vld [vmem:[%s275 + $0x28] sm:$0xff]
        %v347 = vld [vmem:[%s275 + $0x30] sm:$0xff]
        %v348 = vld [vmem:[%s275 + $0x38] sm:$0xff]
        %v349 = vld [vmem:[%s284] sm:$0xff]
        %v350 = vld [vmem:[%s284 + $0x8] sm:$0xff]
        %v351 = vld [vmem:[%s284 + $0x10] sm:$0xff]
        %v352 = vld [vmem:[%s284 + $0x18] sm:$0xff]
        %v353 = vld [vmem:[%s284 + $0x20] sm:$0xff]
        %v354 = vld [vmem:[%s284 + $0x28] sm:$0xff]
        %v355 = vld [vmem:[%s284 + $0x30] sm:$0xff]
        %v356 = vld [vmem:[%s284 + $0x38] sm:$0xff]
        %v357 = vld [vmem:[%s293] sm:$0xff]
        %v358 = vld [vmem:[%s293 + $0x8] sm:$0xff]
        %v359 = vld [vmem:[%s293 + $0x10] sm:$0xff]
        %v360 = vld [vmem:[%s293 + $0x18] sm:$0xff]
        %v361 = vld [vmem:[%s293 + $0x20] sm:$0xff]
        %v362 = vld [vmem:[%s293 + $0x28] sm:$0xff]
        %v363 = vld [vmem:[%s293 + $0x30] sm:$0xff]
        %v364 = vld [vmem:[%s293 + $0x38] sm:$0xff]
        %vm365 = vcmask 261120
        %v367 = vsel %vm365, %v333, 0
        %v370 = vsel %vm365, %v334, 0
        %v373 = vsel %vm365, %v357, 0
        %v376 = vsel %vm365, %v358, 0
        %378 = vmatprep.subr.mxu0 0.0
        %379 = vmatpush1.xpose.msra.mxu0 %v373
        %380 = vmatprep.subr.mxu0 0.0
        %381 = vmatpush1.xpose.msra.mxu0 %v376
        %382 = vmatprep.subr.mxu0 0.0
        %383 = vmatpush1.xpose.msra.mxu0 0.0
        %384 = vmatprep.subr.mxu0 0.0
        %385 = vmatpush1.xpose.msra.mxu0 0.0
        %386 = vmatprep.subr.mxu0 0.0
        %387 = vmatpush1.xpose.msra.mxu0 0.0
        %388 = vmatprep.subr.mxu0 0.0
        %389 = vmatpush1.xpose.msra.mxu0 0.0
        %390 = vmatprep.subr.mxu0 0.0
        %391 = vmatpush1.xpose.msra.mxu0 0.0
        %392 = vmatprep.subr.mxu0 0.0
        %393 = vmatpush1.xpose.msra.mxu0 0.0
        %394 = vmatprep.subr.mxu0 0.0
        %395 = vmatpush1.xpose.msra.mxu0 0.0
        %396 = vmatprep.subr.mxu0 0.0
        %397 = vmatpush1.xpose.msra.mxu0 0.0
        %398 = vmatprep.subr.mxu0 0.0
        %399 = vmatpush1.xpose.msra.mxu0 0.0
        %400 = vmatprep.subr.mxu0 0.0
        %401 = vmatpush1.xpose.msra.mxu0 0.0
        %402 = vmatprep.subr.mxu0 0.0
        %403 = vmatpush1.xpose.msra.mxu0 0.0
        %404 = vmatprep.subr.mxu0 0.0
        %405 = vmatpush1.xpose.msra.mxu0 0.0
        %406 = vmatprep.subr.mxu0 0.0
        %407 = vmatpush1.xpose.msra.mxu0 0.0
        %408 = vmatprep.subr.mxu0 0.0
        %409 = vmatpush1.xpose.msra.mxu0 0.0
        %410 = vmatprep.subr.mxu0 0.0
        %411 = vmatpush1.xpose.msra.mxu0 0.0
        %412 = vmatprep.subr.mxu0 0.0
        %413 = vmatpush1.xpose.msra.mxu0 0.0
        %414 = vmatprep.subr.mxu0 0.0
        %415 = vmatpush1.xpose.msra.mxu0 0.0
        %416 = vmatprep.subr.mxu0 0.0
        %417 = vmatpush1.xpose.msra.mxu0 0.0
        %418 = vmatprep.subr.mxu0 0.0
        %419 = vmatpush1.xpose.msra.mxu0 0.0
        %420 = vmatprep.subr.mxu0 0.0
        %421 = vmatpush1.xpose.msra.mxu0 0.0
        %422 = vmatprep.subr.mxu0 0.0
        %423 = vmatpush1.xpose.msra.mxu0 0.0
        %424 = vmatprep.subr.mxu0 0.0
        %425 = vmatpush1.xpose.msra.mxu0 0.0
        %426 = vmatprep.subr.mxu0 0.0
        %427 = vmatpush1.xpose.msra.mxu0 0.0
        %428 = vmatprep.subr.mxu0 0.0
        %429 = vmatpush1.xpose.msra.mxu0 0.0
        %430 = vmatprep.subr.mxu0 0.0
        %431 = vmatpush1.xpose.msra.mxu0 0.0
        %432 = vmatprep.subr.mxu0 0.0
        %433 = vmatpush1.xpose.msra.mxu0 0.0
        %434 = vmatprep.subr.mxu0 0.0
        %435 = vmatpush1.xpose.msra.mxu0 0.0
        %436 = vmatprep.subr.mxu0 0.0
        %437 = vmatpush1.xpose.msra.mxu0 0.0
        %438 = vmatprep.subr.mxu0 0.0
        %439 = vmatpush1.xpose.msra.mxu0 0.0
        %440 = vmatprep.subr.mxu0 0.0
        %441 = vmatpush1.xpose.msra.mxu0 0.0
        %442 = vmatprep.mubr.f32.mxu0 0.0
        %443 = vmatmul.mubr.f32.gmra.mrb[0].mxu0 %v367
        %v444 = vpop.f32.mrb[0].mxu0
        %v445 = vadd.f32 0.0, %v444
        %v446 = vpop.f32.mrb[0].mxu0
        %447 = vmatprep.mubr.f32.mxu0 0.0
        %448 = vmatmul.mubr.f32.gmra.mrb[0].mxu0 %v370
        %v449 = vpop.f32.mrb[0].mxu0
        %v450 = vadd.f32 0.0, %v449
        %v451 = vpop.f32.mrb[0].mxu0
        %452 = vdwg.mxu0
        %v454 = vsel %vm365, %v335, 0
        %v457 = vsel %vm365, %v336, 0
        %v460 = vsel %vm365, %v359, 0
        %v463 = vsel %vm365, %v360, 0
        %465 = vmatprep.subr.mxu0 0.0
        %466 = vmatpush1.xpose.msra.mxu0 %v460
        %467 = vmatprep.subr.mxu0 0.0
        %468 = vmatpush1.xpose.msra.mxu0 %v463
        %469 = vmatprep.subr.mxu0 0.0
        %470 = vmatpush1.xpose.msra.mxu0 0.0
        %471 = vmatprep.subr.mxu0 0.0
        %472 = vmatpush1.xpose.msra.mxu0 0.0
        %473 = vmatprep.subr.mxu0 0.0
        %474 = vmatpush1.xpose.msra.mxu0 0.0
        %475 = vmatprep.subr.mxu0 0.0
        %476 = vmatpush1.xpose.msra.mxu0 0.0
        %477 = vmatprep.subr.mxu0 0.0
        %478 = vmatpush1.xpose.msra.mxu0 0.0
        %479 = vmatprep.subr.mxu0 0.0
        %480 = vmatpush1.xpose.msra.mxu0 0.0
        %481 = vmatprep.subr.mxu0 0.0
        %482 = vmatpush1.xpose.msra.mxu0 0.0
        %483 = vmatprep.subr.mxu0 0.0
        %484 = vmatpush1.xpose.msra.mxu0 0.0
        %485 = vmatprep.subr.mxu0 0.0
        %486 = vmatpush1.xpose.msra.mxu0 0.0
        %487 = vmatprep.subr.mxu0 0.0
        %488 = vmatpush1.xpose.msra.mxu0 0.0
        %489 = vmatprep.subr.mxu0 0.0
        %490 = vmatpush1.xpose.msra.mxu0 0.0
        %491 = vmatprep.subr.mxu0 0.0
        %492 = vmatpush1.xpose.msra.mxu0 0.0
        %493 = vmatprep.subr.mxu0 0.0
        %494 = vmatpush1.xpose.msra.mxu0 0.0
        %495 = vmatprep.subr.mxu0 0.0
        %496 = vmatpush1.xpose.msra.mxu0 0.0
        %497 = vmatprep.subr.mxu0 0.0
        %498 = vmatpush1.xpose.msra.mxu0 0.0
        %499 = vmatprep.subr.mxu0 0.0
        %500 = vmatpush1.xpose.msra.mxu0 0.0
        %501 = vmatprep.subr.mxu0 0.0
        %502 = vmatpush1.xpose.msra.mxu0 0.0
        %503 = vmatprep.subr.mxu0 0.0
        %504 = vmatpush1.xpose.msra.mxu0 0.0
        %505 = vmatprep.subr.mxu0 0.0
        %506 = vmatpush1.xpose.msra.mxu0 0.0
        %507 = vmatprep.subr.mxu0 0.0
        %508 = vmatpush1.xpose.msra.mxu0 0.0
        %509 = vmatprep.subr.mxu0 0.0
        %510 = vmatpush1.xpose.msra.mxu0 0.0
        %511 = vmatprep.subr.mxu0 0.0
        %512 = vmatpush1.xpose.msra.mxu0 0.0
        %513 = vmatprep.subr.mxu0 0.0
        %514 = vmatpush1.xpose.msra.mxu0 0.0
        %515 = vmatprep.subr.mxu0 0.0
        %516 = vmatpush1.xpose.msra.mxu0 0.0
        %517 = vmatprep.subr.mxu0 0.0
        %518 = vmatpush1.xpose.msra.mxu0 0.0
        %519 = vmatprep.subr.mxu0 0.0
        %520 = vmatpush1.xpose.msra.mxu0 0.0
        %521 = vmatprep.subr.mxu0 0.0
        %522 = vmatpush1.xpose.msra.mxu0 0.0
        %523 = vmatprep.subr.mxu0 0.0
        %524 = vmatpush1.xpose.msra.mxu0 0.0
        %525 = vmatprep.subr.mxu0 0.0
        %526 = vmatpush1.xpose.msra.mxu0 0.0
        %527 = vmatprep.subr.mxu0 0.0
        %528 = vmatpush1.xpose.msra.mxu0 0.0
        %529 = vmatprep.mubr.f32.mxu0 0.0
        %530 = vmatmul.mubr.f32.gmra.mrb[0].mxu0 %v454
        %v531 = vpop.f32.mrb[0].mxu0
        %v532 = vadd.f32 0.0, %v531
        %v533 = vpop.f32.mrb[0].mxu0
        %534 = vmatprep.mubr.f32.mxu0 0.0
        %535 = vmatmul.mubr.f32.gmra.mrb[0].mxu0 %v457
        %v536 = vpop.f32.mrb[0].mxu0
        %v537 = vadd.f32 0.0, %v536
        %v538 = vpop.f32.mrb[0].mxu0
        %539 = vdwg.mxu0
        %v541 = vsel %vm365, %v337, 0
        %v544 = vsel %vm365, %v338, 0
        %v547 = vsel %vm365, %v361, 0
        %v550 = vsel %vm365, %v362, 0
        %552 = vmatprep.subr.mxu0 0.0
        %553 = vmatpush1.xpose.msra.mxu0 %v547
        %554 = vmatprep.subr.mxu0 0.0
        %555 = vmatpush1.xpose.msra.mxu0 %v550
        %556 = vmatprep.subr.mxu0 0.0
        %557 = vmatpush1.xpose.msra.mxu0 0.0
        %558 = vmatprep.subr.mxu0 0.0
        %559 = vmatpush1.xpose.msra.mxu0 0.0
        %560 = vmatprep.subr.mxu0 0.0
        %561 = vmatpush1.xpose.msra.mxu0 0.0
        %562 = vmatprep.subr.mxu0 0.0
        %563 = vmatpush1.xpose.msra.mxu0 0.0
        %564 = vmatprep.subr.mxu0 0.0
        %565 = vmatpush1.xpose.msra.mxu0 0.0
        %566 = vmatprep.subr.mxu0 0.0
        %567 = vmatpush1.xpose.msra.mxu0 0.0
        %568 = vmatprep.subr.mxu0 0.0
        %569 = vmatpush1.xpose.msra.mxu0 0.0
        %570 = vmatprep.subr.mxu0 0.0
        %571 = vmatpush1.xpose.msra.mxu0 0.0
        %572 = vmatprep.subr.mxu0 0.0
        %573 = vmatpush1.xpose.msra.mxu0 0.0
        %574 = vmatprep.subr.mxu0 0.0
        %575 = vmatpush1.xpose.msra.mxu0 0.0
        %576 = vmatprep.subr.mxu0 0.0
        %577 = vmatpush1.xpose.msra.mxu0 0.0
        %578 = vmatprep.subr.mxu0 0.0
        %579 = vmatpush1.xpose.msra.mxu0 0.0
        %580 = vmatprep.subr.mxu0 0.0
        %581 = vmatpush1.xpose.msra.mxu0 0.0
        %582 = vmatprep.subr.mxu0 0.0
        %583 = vmatpush1.xpose.msra.mxu0 0.0
        %584 = vmatprep.subr.mxu0 0.0
        %585 = vmatpush1.xpose.msra.mxu0 0.0
        %586 = vmatprep.subr.mxu0 0.0
        %587 = vmatpush1.xpose.msra.mxu0 0.0
        %588 = vmatprep.subr.mxu0 0.0
        %589 = vmatpush1.xpose.msra.mxu0 0.0
        %590 = vmatprep.subr.mxu0 0.0
        %591 = vmatpush1.xpose.msra.mxu0 0.0
        %592 = vmatprep.subr.mxu0 0.0
        %593 = vmatpush1.xpose.msra.mxu0 0.0
        %594 = vmatprep.subr.mxu0 0.0
        %595 = vmatpush1.xpose.msra.mxu0 0.0
        %596 = vmatprep.subr.mxu0 0.0
        %597 = vmatpush1.xpose.msra.mxu0 0.0
        %598 = vmatprep.subr.mxu0 0.0
        %599 = vmatpush1.xpose.msra.mxu0 0.0
        %600 = vmatprep.subr.mxu0 0.0
        %601 = vmatpush1.xpose.msra.mxu0 0.0
        %602 = vmatprep.subr.mxu0 0.0
        %603 = vmatpush1.xpose.msra.mxu0 0.0
        %604 = vmatprep.subr.mxu0 0.0
        %605 = vmatpush1.xpose.msra.mxu0 0.0
        %606 = vmatprep.subr.mxu0 0.0
        %607 = vmatpush1.xpose.msra.mxu0 0.0
        %608 = vmatprep.subr.mxu0 0.0
        %609 = vmatpush1.xpose.msra.mxu0 0.0
        %610 = vmatprep.subr.mxu0 0.0
        %611 = vmatpush1.xpose.msra.mxu0 0.0
        %612 = vmatprep.subr.mxu0 0.0
        %613 = vmatpush1.xpose.msra.mxu0 0.0
        %614 = vmatprep.subr.mxu0 0.0
        %615 = vmatpush1.xpose.msra.mxu0 0.0
        %616 = vmatprep.mubr.f32.mxu0 0.0
        %617 = vmatmul.mubr.f32.gmra.mrb[0].mxu0 %v541
        %v618 = vpop.f32.mrb[0].mxu0
        %v619 = vadd.f32 0.0, %v618
        %v620 = vpop.f32.mrb[0].mxu0
        %621 = vmatprep.mubr.f32.mxu0 0.0
        %622 = vmatmul.mubr.f32.gmra.mrb[0].mxu0 %v544
        %v623 = vpop.f32.mrb[0].mxu0
        %v624 = vadd.f32 0.0, %v623
        %v625 = vpop.f32.mrb[0].mxu0
        %626 = vdwg.mxu0
        %v628 = vsel %vm365, %v339, 0
        %v631 = vsel %vm365, %v340, 0
        %v634 = vsel %vm365, %v363, 0
        %v637 = vsel %vm365, %v364, 0
        %639 = vmatprep.subr.mxu0 0.0
        %640 = vmatpush1.xpose.msra.mxu0 %v634
        %641 = vmatprep.subr.mxu0 0.0
        %642 = vmatpush1.xpose.msra.mxu0 %v637
        %643 = vmatprep.subr.mxu0 0.0
        %644 = vmatpush1.xpose.msra.mxu0 0.0
        %645 = vmatprep.subr.mxu0 0.0
        %646 = vmatpush1.xpose.msra.mxu0 0.0
        %647 = vmatprep.subr.mxu0 0.0
        %648 = vmatpush1.xpose.msra.mxu0 0.0
        %649 = vmatprep.subr.mxu0 0.0
        %650 = vmatpush1.xpose.msra.mxu0 0.0
        %651 = vmatprep.subr.mxu0 0.0
        %652 = vmatpush1.xpose.msra.mxu0 0.0
        %653 = vmatprep.subr.mxu0 0.0
        %654 = vmatpush1.xpose.msra.mxu0 0.0
        %655 = vmatprep.subr.mxu0 0.0
        %656 = vmatpush1.xpose.msra.mxu0 0.0
        %657 = vmatprep.subr.mxu0 0.0
        %658 = vmatpush1.xpose.msra.mxu0 0.0
        %659 = vmatprep.subr.mxu0 0.0
        %660 = vmatpush1.xpose.msra.mxu0 0.0
        %661 = vmatprep.subr.mxu0 0.0
        %662 = vmatpush1.xpose.msra.mxu0 0.0
        %663 = vmatprep.subr.mxu0 0.0
        %664 = vmatpush1.xpose.msra.mxu0 0.0
        %665 = vmatprep.subr.mxu0 0.0
        %666 = vmatpush1.xpose.msra.mxu0 0.0
        %667 = vmatprep.subr.mxu0 0.0
        %668 = vmatpush1.xpose.msra.mxu0 0.0
        %669 = vmatprep.subr.mxu0 0.0
        %670 = vmatpush1.xpose.msra.mxu0 0.0
        %671 = vmatprep.subr.mxu0 0.0
        %672 = vmatpush1.xpose.msra.mxu0 0.0
        %673 = vmatprep.subr.mxu0 0.0
        %674 = vmatpush1.xpose.msra.mxu0 0.0
        %675 = vmatprep.subr.mxu0 0.0
        %676 = vmatpush1.xpose.msra.mxu0 0.0
        %677 = vmatprep.subr.mxu0 0.0
        %678 = vmatpush1.xpose.msra.mxu0 0.0
        %679 = vmatprep.subr.mxu0 0.0
        %680 = vmatpush1.xpose.msra.mxu0 0.0
        %681 = vmatprep.subr.mxu0 0.0
        %682 = vmatpush1.xpose.msra.mxu0 0.0
        %683 = vmatprep.subr.mxu0 0.0
        %684 = vmatpush1.xpose.msra.mxu0 0.0
        %685 = vmatprep.subr.mxu0 0.0
        %686 = vmatpush1.xpose.msra.mxu0 0.0
        %687 = vmatprep.subr.mxu0 0.0
        %688 = vmatpush1.xpose.msra.mxu0 0.0
        %689 = vmatprep.subr.mxu0 0.0
        %690 = vmatpush1.xpose.msra.mxu0 0.0
        %691 = vmatprep.subr.mxu0 0.0
        %692 = vmatpush1.xpose.msra.mxu0 0.0
        %693 = vmatprep.subr.mxu0 0.0
        %694 = vmatpush1.xpose.msra.mxu0 0.0
        %695 = vmatprep.subr.mxu0 0.0
        %696 = vmatpush1.xpose.msra.mxu0 0.0
        %697 = vmatprep.subr.mxu0 0.0
        %698 = vmatpush1.xpose.msra.mxu0 0.0
        %699 = vmatprep.subr.mxu0 0.0
        %700 = vmatpush1.xpose.msra.mxu0 0.0
        %701 = vmatprep.subr.mxu0 0.0
        %702 = vmatpush1.xpose.msra.mxu0 0.0
        %703 = vmatprep.mubr.f32.mxu0 0.0
        %704 = vmatmul.mubr.f32.gmra.mrb[0].mxu0 %v628
        %v705 = vpop.f32.mrb[0].mxu0
        %v706 = vadd.f32 0.0, %v705
        %v707 = vpop.f32.mrb[0].mxu0
        %708 = vmatprep.mubr.f32.mxu0 0.0
        %709 = vmatmul.mubr.f32.gmra.mrb[0].mxu0 %v631
        %v710 = vpop.f32.mrb[0].mxu0
        %v711 = vadd.f32 0.0, %v710
        %v712 = vpop.f32.mrb[0].mxu0
        %713 = vdwg.mxu0
        %v714 = vmul.f32 %v445, 0.17677669
        %v715 = vmul.f32 %v450, 0.17677669
        %v716 = vmul.f32 %v532, 0.17677669
        %v717 = vmul.f32 %v537, 0.17677669
        %v718 = vmul.f32 %v619, 0.17677669
        %v719 = vmul.f32 %v624, 0.17677669
        %v720 = vmul.f32 %v706, 0.17677669
        %v721 = vmul.f32 %v711, 0.17677669
        %vm722 = vcmask 130048
        %v723 = vsel %vm722, %v714, -inf
        %v724 = vsel %vm722, %v716, -inf
        %v725 = vsel %vm722, %v718, -inf
        %v726 = vmax.f32 %v723, %v725
        %v727 = vsel %vm722, %v720, -inf
        %v728 = vmax.f32 %v724, %v727
        %v729 = vmax.f32 %v726, %v728
        %v730 = vsel %vm722, %v715, -inf
        %v731 = vsel %vm722, %v717, -inf
        %v732 = vsel %vm722, %v719, -inf
        %v733 = vmax.f32 %v730, %v732
        %v734 = vsel %vm722, %v721, -inf
        %v735 = vmax.f32 %v731, %v734
        %v736 = vmax.f32 %v733, %v735
        %v737 = vsub.f32 %v714, %v729
        %v738 = vsub.f32 %v715, %v736
        %v739 = vsub.f32 %v716, %v729
        %v740 = vsub.f32 %v717, %v736
        %v741 = vsub.f32 %v718, %v729
        %v742 = vsub.f32 %v719, %v736
        %v743 = vsub.f32 %v720, %v729
        %v744 = vsub.f32 %v721, %v736
        %v745 = vmul.f32 %v737, 1.442695
        %v746 = vpow.pop %v745
        %v747 = vmul.f32 %v738, 1.442695
        %v748 = vpow.pop %v747
        %v749 = vmul.f32 %v739, 1.442695
        %v750 = vpow.pop %v749
        %v751 = vmul.f32 %v740, 1.442695
        %v752 = vpow.pop %v751
        %v753 = vmul.f32 %v741, 1.442695
        %v754 = vpow.pop %v753
        %v755 = vmul.f32 %v742, 1.442695
        %v756 = vpow.pop %v755
        %v757 = vmul.f32 %v743, 1.442695
        %v758 = vpow.pop %v757
        %v759 = vmul.f32 %v744, 1.442695
        %v760 = vpow.pop %v759
        %v761 = vsel %vm722, %v746, 0.0
        %v762 = vsel %vm722, %v750, 0.0
        %v763 = vadd.f32 %v761, %v762
        %v764 = vsel %vm722, %v754, 0.0
        %v765 = vadd.f32 %v763, %v764
        %v766 = vsel %vm722, %v758, 0.0
        %v767 = vadd.f32 %v765, %v766
        %v768 = vsel %vm722, %v748, 0.0
        %v769 = vsel %vm722, %v752, 0.0
        %v770 = vadd.f32 %v768, %v769
        %v771 = vsel %vm722, %v756, 0.0
        %v772 = vadd.f32 %v770, %v771
        %v773 = vsel %vm722, %v760, 0.0
        %v774 = vadd.f32 %v772, %v773
        %v775 = vrcp.pop %v767
        %v776 = vrcp.pop %v774
        %v777 = vmul.f32 %v746, %v775
        %v778 = vmul.f32 %v748, %v776
        %v779 = vmul.f32 %v750, %v775
        %v780 = vmul.f32 %v752, %v776
        %v781 = vmul.f32 %v754, %v775
        %v782 = vmul.f32 %v756, %v776
        %v783 = vmul.f32 %v758, %v775
        %v784 = vmul.f32 %v760, %v776
        %v786 = vsel %vm365, %v341, 0
        %v789 = vsel %vm365, %v342, 0
        %791 = vmatprep.subr.mxu0 0.0
        %792 = vmatpush1.xpose.msra.mxu0 %v786
        %793 = vmatprep.subr.mxu0 0.0
        %794 = vmatpush1.xpose.msra.mxu0 %v789
        %795 = vmatprep.subr.mxu0 0.0
        %796 = vmatpush1.xpose.msra.mxu0 0.0
        %797 = vmatprep.subr.mxu0 0.0
        %798 = vmatpush1.xpose.msra.mxu0 0.0
        %799 = vmatprep.subr.mxu0 0.0
        %800 = vmatpush1.xpose.msra.mxu0 0.0
        %801 = vmatprep.subr.mxu0 0.0
        %802 = vmatpush1.xpose.msra.mxu0 0.0
        %803 = vmatprep.subr.mxu0 0.0
        %804 = vmatpush1.xpose.msra.mxu0 0.0
        %805 = vmatprep.subr.mxu0 0.0
        %806 = vmatpush1.xpose.msra.mxu0 0.0
        %807 = vmatprep.subr.mxu0 0.0
        %808 = vmatpush1.xpose.msra.mxu0 0.0
        %809 = vmatprep.subr.mxu0 0.0
        %810 = vmatpush1.xpose.msra.mxu0 0.0
        %811 = vmatprep.subr.mxu0 0.0
        %812 = vmatpush1.xpose.msra.mxu0 0.0
        %813 = vmatprep.subr.mxu0 0.0
        %814 = vmatpush1.xpose.msra.mxu0 0.0
        %815 = vmatprep.subr.mxu0 0.0
        %816 = vmatpush1.xpose.msra.mxu0 0.0
        %817 = vmatprep.subr.mxu0 0.0
        %818 = vmatpush1.xpose.msra.mxu0 0.0
        %819 = vmatprep.subr.mxu0 0.0
        %820 = vmatpush1.xpose.msra.mxu0 0.0
        %821 = vmatprep.subr.mxu0 0.0
        %822 = vmatpush1.xpose.msra.mxu0 0.0
        %823 = vmatprep.subr.mxu0 0.0
        %824 = vmatpush1.xpose.msra.mxu0 0.0
        %825 = vmatprep.subr.mxu0 0.0
        %826 = vmatpush1.xpose.msra.mxu0 0.0
        %827 = vmatprep.subr.mxu0 0.0
        %828 = vmatpush1.xpose.msra.mxu0 0.0
        %829 = vmatprep.subr.mxu0 0.0
        %830 = vmatpush1.xpose.msra.mxu0 0.0
        %831 = vmatprep.subr.mxu0 0.0
        %832 = vmatpush1.xpose.msra.mxu0 0.0
        %833 = vmatprep.subr.mxu0 0.0
        %834 = vmatpush1.xpose.msra.mxu0 0.0
        %835 = vmatprep.subr.mxu0 0.0
        %836 = vmatpush1.xpose.msra.mxu0 0.0
        %837 = vmatprep.subr.mxu0 0.0
        %838 = vmatpush1.xpose.msra.mxu0 0.0
        %839 = vmatprep.subr.mxu0 0.0
        %840 = vmatpush1.xpose.msra.mxu0 0.0
        %841 = vmatprep.subr.mxu0 0.0
        %842 = vmatpush1.xpose.msra.mxu0 0.0
        %843 = vmatprep.subr.mxu0 0.0
        %844 = vmatpush1.xpose.msra.mxu0 0.0
        %845 = vmatprep.subr.mxu0 0.0
        %846 = vmatpush1.xpose.msra.mxu0 0.0
        %847 = vmatprep.subr.mxu0 0.0
        %848 = vmatpush1.xpose.msra.mxu0 0.0
        %849 = vmatprep.subr.mxu0 0.0
        %850 = vmatpush1.xpose.msra.mxu0 0.0
        %851 = vmatprep.subr.mxu0 0.0
        %852 = vmatpush1.xpose.msra.mxu0 0.0
        %853 = vmatprep.subr.mxu0 0.0
        %854 = vmatpush1.xpose.msra.mxu0 0.0
        %855 = vmatprep.mubr.f32.mxu0 0.0
        %856 = vmatmul.mubr.f32.gmra.mrb[0].mxu0 %v373
        %v857 = vpop.f32.mrb[0].mxu0
        %v858 = vadd.f32 0.0, %v857
        %v859 = vpop.f32.mrb[0].mxu0
        %860 = vmatprep.mubr.f32.mxu0 0.0
        %861 = vmatmul.mubr.f32.gmra.mrb[0].mxu0 %v376
        %v862 = vpop.f32.mrb[0].mxu0
        %v863 = vadd.f32 0.0, %v862
        %v864 = vpop.f32.mrb[0].mxu0
        %865 = vdwg.mxu0
        %v867 = vsel %vm365, %v343, 0
        %v870 = vsel %vm365, %v344, 0
        %872 = vmatprep.subr.mxu0 0.0
        %873 = vmatpush1.xpose.msra.mxu0 %v867
        %874 = vmatprep.subr.mxu0 0.0
        %875 = vmatpush1.xpose.msra.mxu0 %v870
        %876 = vmatprep.subr.mxu0 0.0
        %877 = vmatpush1.xpose.msra.mxu0 0.0
        %878 = vmatprep.subr.mxu0 0.0
        %879 = vmatpush1.xpose.msra.mxu0 0.0
        %880 = vmatprep.subr.mxu0 0.0
        %881 = vmatpush1.xpose.msra.mxu0 0.0
        %882 = vmatprep.subr.mxu0 0.0
        %883 = vmatpush1.xpose.msra.mxu0 0.0
        %884 = vmatprep.subr.mxu0 0.0
        %885 = vmatpush1.xpose.msra.mxu0 0.0
        %886 = vmatprep.subr.mxu0 0.0
        %887 = vmatpush1.xpose.msra.mxu0 0.0
        %888 = vmatprep.subr.mxu0 0.0
        %889 = vmatpush1.xpose.msra.mxu0 0.0
        %890 = vmatprep.subr.mxu0 0.0
        %891 = vmatpush1.xpose.msra.mxu0 0.0
        %892 = vmatprep.subr.mxu0 0.0
        %893 = vmatpush1.xpose.msra.mxu0 0.0
        %894 = vmatprep.subr.mxu0 0.0
        %895 = vmatpush1.xpose.msra.mxu0 0.0
        %896 = vmatprep.subr.mxu0 0.0
        %897 = vmatpush1.xpose.msra.mxu0 0.0
        %898 = vmatprep.subr.mxu0 0.0
        %899 = vmatpush1.xpose.msra.mxu0 0.0
        %900 = vmatprep.subr.mxu0 0.0
        %901 = vmatpush1.xpose.msra.mxu0 0.0
        %902 = vmatprep.subr.mxu0 0.0
        %903 = vmatpush1.xpose.msra.mxu0 0.0
        %904 = vmatprep.subr.mxu0 0.0
        %905 = vmatpush1.xpose.msra.mxu0 0.0
        %906 = vmatprep.subr.mxu0 0.0
        %907 = vmatpush1.xpose.msra.mxu0 0.0
        %908 = vmatprep.subr.mxu0 0.0
        %909 = vmatpush1.xpose.msra.mxu0 0.0
        %910 = vmatprep.subr.mxu0 0.0
        %911 = vmatpush1.xpose.msra.mxu0 0.0
        %912 = vmatprep.subr.mxu0 0.0
        %913 = vmatpush1.xpose.msra.mxu0 0.0
        %914 = vmatprep.subr.mxu0 0.0
        %915 = vmatpush1.xpose.msra.mxu0 0.0
        %916 = vmatprep.subr.mxu0 0.0
        %917 = vmatpush1.xpose.msra.mxu0 0.0
        %918 = vmatprep.subr.mxu0 0.0
        %919 = vmatpush1.xpose.msra.mxu0 0.0
        %920 = vmatprep.subr.mxu0 0.0
        %921 = vmatpush1.xpose.msra.mxu0 0.0
        %922 = vmatprep.subr.mxu0 0.0
        %923 = vmatpush1.xpose.msra.mxu0 0.0
        %924 = vmatprep.subr.mxu0 0.0
        %925 = vmatpush1.xpose.msra.mxu0 0.0
        %926 = vmatprep.subr.mxu0 0.0
        %927 = vmatpush1.xpose.msra.mxu0 0.0
        %928 = vmatprep.subr.mxu0 0.0
        %929 = vmatpush1.xpose.msra.mxu0 0.0
        %930 = vmatprep.subr.mxu0 0.0
        %931 = vmatpush1.xpose.msra.mxu0 0.0
        %932 = vmatprep.subr.mxu0 0.0
        %933 = vmatpush1.xpose.msra.mxu0 0.0
        %934 = vmatprep.subr.mxu0 0.0
        %935 = vmatpush1.xpose.msra.mxu0 0.0
        %936 = vmatprep.mubr.f32.mxu0 0.0
        %937 = vmatmul.mubr.f32.gmra.mrb[0].mxu0 %v460
        %v938 = vpop.f32.mrb[0].mxu0
        %v939 = vadd.f32 0.0, %v938
        %v940 = vpop.f32.mrb[0].mxu0
        %941 = vmatprep.mubr.f32.mxu0 0.0
        %942 = vmatmul.mubr.f32.gmra.mrb[0].mxu0 %v463
        %v943 = vpop.f32.mrb[0].mxu0
        %v944 = vadd.f32 0.0, %v943
        %v945 = vpop.f32.mrb[0].mxu0
        %946 = vdwg.mxu0
        %v948 = vsel %vm365, %v345, 0
        %v951 = vsel %vm365, %v346, 0
        %953 = vmatprep.subr.mxu0 0.0
        %954 = vmatpush1.xpose.msra.mxu0 %v948
        %955 = vmatprep.subr.mxu0 0.0
        %956 = vmatpush1.xpose.msra.mxu0 %v951
        %957 = vmatprep.subr.mxu0 0.0
        %958 = vmatpush1.xpose.msra.mxu0 0.0
        %959 = vmatprep.subr.mxu0 0.0
        %960 = vmatpush1.xpose.msra.mxu0 0.0
        %961 = vmatprep.subr.mxu0 0.0
        %962 = vmatpush1.xpose.msra.mxu0 0.0
        %963 = vmatprep.subr.mxu0 0.0
        %964 = vmatpush1.xpose.msra.mxu0 0.0
        %965 = vmatprep.subr.mxu0 0.0
        %966 = vmatpush1.xpose.msra.mxu0 0.0
        %967 = vmatprep.subr.mxu0 0.0
        %968 = vmatpush1.xpose.msra.mxu0 0.0
        %969 = vmatprep.subr.mxu0 0.0
        %970 = vmatpush1.xpose.msra.mxu0 0.0
        %971 = vmatprep.subr.mxu0 0.0
        %972 = vmatpush1.xpose.msra.mxu0 0.0
        %973 = vmatprep.subr.mxu0 0.0
        %974 = vmatpush1.xpose.msra.mxu0 0.0
        %975 = vmatprep.subr.mxu0 0.0
        %976 = vmatpush1.xpose.msra.mxu0 0.0
        %977 = vmatprep.subr.mxu0 0.0
        %978 = vmatpush1.xpose.msra.mxu0 0.0
        %979 = vmatprep.subr.mxu0 0.0
        %980 = vmatpush1.xpose.msra.mxu0 0.0
        %981 = vmatprep.subr.mxu0 0.0
        %982 = vmatpush1.xpose.msra.mxu0 0.0
        %983 = vmatprep.subr.mxu0 0.0
        %984 = vmatpush1.xpose.msra.mxu0 0.0
        %985 = vmatprep.subr.mxu0 0.0
        %986 = vmatpush1.xpose.msra.mxu0 0.0
        %987 = vmatprep.subr.mxu0 0.0
        %988 = vmatpush1.xpose.msra.mxu0 0.0
        %989 = vmatprep.subr.mxu0 0.0
        %990 = vmatpush1.xpose.msra.mxu0 0.0
        %991 = vmatprep.subr.mxu0 0.0
        %992 = vmatpush1.xpose.msra.mxu0 0.0
        %993 = vmatprep.subr.mxu0 0.0
        %994 = vmatpush1.xpose.msra.mxu0 0.0
        %995 = vmatprep.subr.mxu0 0.0
        %996 = vmatpush1.xpose.msra.mxu0 0.0
        %997 = vmatprep.subr.mxu0 0.0
        %998 = vmatpush1.xpose.msra.mxu0 0.0
        %999 = vmatprep.subr.mxu0 0.0
        %1000 = vmatpush1.xpose.msra.mxu0 0.0
        %1001 = vmatprep.subr.mxu0 0.0
        %1002 = vmatpush1.xpose.msra.mxu0 0.0
        %1003 = vmatprep.subr.mxu0 0.0
        %1004 = vmatpush1.xpose.msra.mxu0 0.0
        %1005 = vmatprep.subr.mxu0 0.0
        %1006 = vmatpush1.xpose.msra.mxu0 0.0
        %1007 = vmatprep.subr.mxu0 0.0
        %1008 = vmatpush1.xpose.msra.mxu0 0.0
        %1009 = vmatprep.subr.mxu0 0.0
        %1010 = vmatpush1.xpose.msra.mxu0 0.0
        %1011 = vmatprep.subr.mxu0 0.0
        %1012 = vmatpush1.xpose.msra.mxu0 0.0
        %1013 = vmatprep.subr.mxu0 0.0
        %1014 = vmatpush1.xpose.msra.mxu0 0.0
        %1015 = vmatprep.subr.mxu0 0.0
        %1016 = vmatpush1.xpose.msra.mxu0 0.0
        %1017 = vmatprep.mubr.f32.mxu0 0.0
        %1018 = vmatmul.mubr.f32.gmra.mrb[0].mxu0 %v547
        %v1019 = vpop.f32.mrb[0].mxu0
        %v1020 = vadd.f32 0.0, %v1019
        %v1021 = vpop.f32.mrb[0].mxu0
        %1022 = vmatprep.mubr.f32.mxu0 0.0
        %1023 = vmatmul.mubr.f32.gmra.mrb[0].mxu0 %v550
        %v1024 = vpop.f32.mrb[0].mxu0
        %v1025 = vadd.f32 0.0, %v1024
        %v1026 = vpop.f32.mrb[0].mxu0
        %1027 = vdwg.mxu0
        %v1029 = vsel %vm365, %v347, 0
        %v1032 = vsel %vm365, %v348, 0
        %1034 = vmatprep.subr.mxu0 0.0
        %1035 = vmatpush1.xpose.msra.mxu0 %v1029
        %1036 = vmatprep.subr.mxu0 0.0
        %1037 = vmatpush1.xpose.msra.mxu0 %v1032
        %1038 = vmatprep.subr.mxu0 0.0
        %1039 = vmatpush1.xpose.msra.mxu0 0.0
        %1040 = vmatprep.subr.mxu0 0.0
        %1041 = vmatpush1.xpose.msra.mxu0 0.0
        %1042 = vmatprep.subr.mxu0 0.0
        %1043 = vmatpush1.xpose.msra.mxu0 0.0
        %1044 = vmatprep.subr.mxu0 0.0
        %1045 = vmatpush1.xpose.msra.mxu0 0.0
        %1046 = vmatprep.subr.mxu0 0.0
        %1047 = vmatpush1.xpose.msra.mxu0 0.0
        %1048 = vmatprep.subr.mxu0 0.0
        %1049 = vmatpush1.xpose.msra.mxu0 0.0
        %1050 = vmatprep.subr.mxu0 0.0
        %1051 = vmatpush1.xpose.msra.mxu0 0.0
        %1052 = vmatprep.subr.mxu0 0.0
        %1053 = vmatpush1.xpose.msra.mxu0 0.0
        %1054 = vmatprep.subr.mxu0 0.0
        %1055 = vmatpush1.xpose.msra.mxu0 0.0
        %1056 = vmatprep.subr.mxu0 0.0
        %1057 = vmatpush1.xpose.msra.mxu0 0.0
        %1058 = vmatprep.subr.mxu0 0.0
        %1059 = vmatpush1.xpose.msra.mxu0 0.0
        %1060 = vmatprep.subr.mxu0 0.0
        %1061 = vmatpush1.xpose.msra.mxu0 0.0
        %1062 = vmatprep.subr.mxu0 0.0
        %1063 = vmatpush1.xpose.msra.mxu0 0.0
        %1064 = vmatprep.subr.mxu0 0.0
        %1065 = vmatpush1.xpose.msra.mxu0 0.0
        %1066 = vmatprep.subr.mxu0 0.0
        %1067 = vmatpush1.xpose.msra.mxu0 0.0
        %1068 = vmatprep.subr.mxu0 0.0
        %1069 = vmatpush1.xpose.msra.mxu0 0.0
        %1070 = vmatprep.subr.mxu0 0.0
        %1071 = vmatpush1.xpose.msra.mxu0 0.0
        %1072 = vmatprep.subr.mxu0 0.0
        %1073 = vmatpush1.xpose.msra.mxu0 0.0
        %1074 = vmatprep.subr.mxu0 0.0
        %1075 = vmatpush1.xpose.msra.mxu0 0.0
        %1076 = vmatprep.subr.mxu0 0.0
        %1077 = vmatpush1.xpose.msra.mxu0 0.0
        %1078 = vmatprep.subr.mxu0 0.0
        %1079 = vmatpush1.xpose.msra.mxu0 0.0
        %1080 = vmatprep.subr.mxu0 0.0
        %1081 = vmatpush1.xpose.msra.mxu0 0.0
        %1082 = vmatprep.subr.mxu0 0.0
        %1083 = vmatpush1.xpose.msra.mxu0 0.0
        %1084 = vmatprep.subr.mxu0 0.0
        %1085 = vmatpush1.xpose.msra.mxu0 0.0
        %1086 = vmatprep.subr.mxu0 0.0
        %1087 = vmatpush1.xpose.msra.mxu0 0.0
        %1088 = vmatprep.subr.mxu0 0.0
        %1089 = vmatpush1.xpose.msra.mxu0 0.0
        %1090 = vmatprep.subr.mxu0 0.0
        %1091 = vmatpush1.xpose.msra.mxu0 0.0
        %1092 = vmatprep.subr.mxu0 0.0
        %1093 = vmatpush1.xpose.msra.mxu0 0.0
        %1094 = vmatprep.subr.mxu0 0.0
        %1095 = vmatpush1.xpose.msra.mxu0 0.0
        %1096 = vmatprep.subr.mxu0 0.0
        %1097 = vmatpush1.xpose.msra.mxu0 0.0
        %1098 = vmatprep.mubr.f32.mxu0 0.0
        %1099 = vmatmul.mubr.f32.gmra.mrb[0].mxu0 %v634
        %v1100 = vpop.f32.mrb[0].mxu0
        %v1101 = vadd.f32 0.0, %v1100
        %v1102 = vpop.f32.mrb[0].mxu0
        %1103 = vmatprep.mubr.f32.mxu0 0.0
        %1104 = vmatmul.mubr.f32.gmra.mrb[0].mxu0 %v637
        %v1105 = vpop.f32.mrb[0].mxu0
        %v1106 = vadd.f32 0.0, %v1105
        %v1107 = vpop.f32.mrb[0].mxu0
        %1108 = vdwg.mxu0
        %v1109 = vmul.f32 %v858, 0.17677669
        %v1110 = vmul.f32 %v863, 0.17677669
        %v1111 = vmul.f32 %v939, 0.17677669
        %v1112 = vmul.f32 %v944, 0.17677669
        %v1113 = vmul.f32 %v1020, 0.17677669
        %v1114 = vmul.f32 %v1025, 0.17677669
        %v1115 = vmul.f32 %v1101, 0.17677669
        %v1116 = vmul.f32 %v1106, 0.17677669
        %v1117 = vsel %vm722, %v1109, -inf
        %v1118 = vsel %vm722, %v1111, -inf
        %v1119 = vsel %vm722, %v1113, -inf
        %v1120 = vmax.f32 %v1117, %v1119
        %v1121 = vsel %vm722, %v1115, -inf
        %v1122 = vmax.f32 %v1118, %v1121
        %v1123 = vmax.f32 %v1120, %v1122
        %v1124 = vsel %vm722, %v1110, -inf
        %v1125 = vsel %vm722, %v1112, -inf
        %v1126 = vsel %vm722, %v1114, -inf
        %v1127 = vmax.f32 %v1124, %v1126
        %v1128 = vsel %vm722, %v1116, -inf
        %v1129 = vmax.f32 %v1125, %v1128
        %v1130 = vmax.f32 %v1127, %v1129
        %v1131 = vsub.f32 %v1109, %v1123
        %v1132 = vsub.f32 %v1110, %v1130
        %v1133 = vsub.f32 %v1111, %v1123
        %v1134 = vsub.f32 %v1112, %v1130
        %v1135 = vsub.f32 %v1113, %v1123
        %v1136 = vsub.f32 %v1114, %v1130
        %v1137 = vsub.f32 %v1115, %v1123
        %v1138 = vsub.f32 %v1116, %v1130
        %v1139 = vmul.f32 %v1131, 1.442695
        %v1140 = vpow.pop %v1139
        %v1141 = vmul.f32 %v1132, 1.442695
        %v1142 = vpow.pop %v1141
        %v1143 = vmul.f32 %v1133, 1.442695
        %v1144 = vpow.pop %v1143
        %v1145 = vmul.f32 %v1134, 1.442695
        %v1146 = vpow.pop %v1145
        %v1147 = vmul.f32 %v1135, 1.442695
        %v1148 = vpow.pop %v1147
        %v1149 = vmul.f32 %v1136, 1.442695
        %v1150 = vpow.pop %v1149
        %v1151 = vmul.f32 %v1137, 1.442695
        %v1152 = vpow.pop %v1151
        %v1153 = vmul.f32 %v1138, 1.442695
        %v1154 = vpow.pop %v1153
        %v1155 = vsel %vm722, %v1140, 0.0
        %v1156 = vsel %vm722, %v1144, 0.0
        %v1157 = vadd.f32 %v1155, %v1156
        %v1158 = vsel %vm722, %v1148, 0.0
        %v1159 = vadd.f32 %v1157, %v1158
        %v1160 = vsel %vm722, %v1152, 0.0
        %v1161 = vadd.f32 %v1159, %v1160
        %v1162 = vsel %vm722, %v1142, 0.0
        %v1163 = vsel %vm722, %v1146, 0.0
        %v1164 = vadd.f32 %v1162, %v1163
        %v1165 = vsel %vm722, %v1150, 0.0
        %v1166 = vadd.f32 %v1164, %v1165
        %v1167 = vsel %vm722, %v1154, 0.0
        %v1168 = vadd.f32 %v1166, %v1167
        %v1169 = vrcp.pop %v1161
        %v1170 = vrcp.pop %v1168
        %v1171 = vmul.f32 %v1140, %v1169
        %v1172 = vmul.f32 %v1142, %v1170
        %v1173 = vmul.f32 %v1144, %v1169
        %v1174 = vmul.f32 %v1146, %v1170
        %v1175 = vmul.f32 %v1148, %v1169
        %v1176 = vmul.f32 %v1150, %v1170
        %v1177 = vmul.f32 %v1152, %v1169
        %v1178 = vmul.f32 %v1154, %v1170
        %v1180 = vsel %vm722, %v777, 0
        %v1183 = vsel %vm722, %v778, 0
        %1185 = vmatprep.subr.mxu0 0.0
        %1186 = vmatpush1.msra.mxu0 %v349
        %1187 = vmatprep.subr.mxu0 0.0
        %1188 = vmatpush1.msra.mxu0 %v350
        %1189 = vmatprep.subr.mxu0 0.0
        %1190 = vmatpush1.msra.mxu0 0.0
        %1191 = vmatprep.subr.mxu0 0.0
        %1192 = vmatpush1.msra.mxu0 0.0
        %1193 = vmatprep.subr.mxu0 0.0
        %1194 = vmatpush1.msra.mxu0 0.0
        %1195 = vmatprep.subr.mxu0 0.0
        %1196 = vmatpush1.msra.mxu0 0.0
        %1197 = vmatprep.subr.mxu0 0.0
        %1198 = vmatpush1.msra.mxu0 0.0
        %1199 = vmatprep.subr.mxu0 0.0
        %1200 = vmatpush1.msra.mxu0 0.0
        %1201 = vmatprep.subr.mxu0 0.0
        %1202 = vmatpush1.msra.mxu0 0.0
        %1203 = vmatprep.subr.mxu0 0.0
        %1204 = vmatpush1.msra.mxu0 0.0
        %1205 = vmatprep.subr.mxu0 0.0
        %1206 = vmatpush1.msra.mxu0 0.0
        %1207 = vmatprep.subr.mxu0 0.0
        %1208 = vmatpush1.msra.mxu0 0.0
        %1209 = vmatprep.subr.mxu0 0.0
        %1210 = vmatpush1.msra.mxu0 0.0
        %1211 = vmatprep.subr.mxu0 0.0
        %1212 = vmatpush1.msra.mxu0 0.0
        %1213 = vmatprep.subr.mxu0 0.0
        %1214 = vmatpush1.msra.mxu0 0.0
        %1215 = vmatprep.subr.mxu0 0.0
        %1216 = vmatpush1.msra.mxu0 0.0
        %1217 = vmatprep.subr.mxu0 0.0
        %1218 = vmatpush1.msra.mxu0 0.0
        %1219 = vmatprep.subr.mxu0 0.0
        %1220 = vmatpush1.msra.mxu0 0.0
        %1221 = vmatprep.subr.mxu0 0.0
        %1222 = vmatpush1.msra.mxu0 0.0
        %1223 = vmatprep.subr.mxu0 0.0
        %1224 = vmatpush1.msra.mxu0 0.0
        %1225 = vmatprep.subr.mxu0 0.0
        %1226 = vmatpush1.msra.mxu0 0.0
        %1227 = vmatprep.subr.mxu0 0.0
        %1228 = vmatpush1.msra.mxu0 0.0
        %1229 = vmatprep.subr.mxu0 0.0
        %1230 = vmatpush1.msra.mxu0 0.0
        %1231 = vmatprep.subr.mxu0 0.0
        %1232 = vmatpush1.msra.mxu0 0.0
        %1233 = vmatprep.subr.mxu0 0.0
        %1234 = vmatpush1.msra.mxu0 0.0
        %1235 = vmatprep.subr.mxu0 0.0
        %1236 = vmatpush1.msra.mxu0 0.0
        %1237 = vmatprep.subr.mxu0 0.0
        %1238 = vmatpush1.msra.mxu0 0.0
        %1239 = vmatprep.subr.mxu0 0.0
        %1240 = vmatpush1.msra.mxu0 0.0
        %1241 = vmatprep.subr.mxu0 0.0
        %1242 = vmatpush1.msra.mxu0 0.0
        %1243 = vmatprep.subr.mxu0 0.0
        %1244 = vmatpush1.msra.mxu0 0.0
        %1245 = vmatprep.subr.mxu0 0.0
        %1246 = vmatpush1.msra.mxu0 0.0
        %1247 = vmatprep.subr.mxu0 0.0
        %1248 = vmatpush1.msra.mxu0 0.0
        %1249 = vmatprep.mubr.f32.mxu0 0.0
        %1250 = vmatmul.mubr.f32.gmra.mrb[0].mxu0 %v1180
        %v1251 = vpop.f32.mrb[0].mxu0
        %v1252 = vadd.f32 0.0, %v1251
        %v1253 = vpop.f32.mrb[0].mxu0
        %1254 = vmatprep.mubr.f32.mxu0 0.0
        %1255 = vmatmul.mubr.f32.gmra.mrb[0].mxu0 %v1183
        %v1256 = vpop.f32.mrb[0].mxu0
        %v1257 = vadd.f32 0.0, %v1256
        %v1258 = vpop.f32.mrb[0].mxu0
        %1259 = vdwg.mxu0
        %v1261 = vsel %vm722, %v779, 0
        %v1264 = vsel %vm722, %v780, 0
        %1266 = vmatprep.subr.mxu0 0.0
        %1267 = vmatpush1.msra.mxu0 %v351
        %1268 = vmatprep.subr.mxu0 0.0
        %1269 = vmatpush1.msra.mxu0 %v352
        %1270 = vmatprep.subr.mxu0 0.0
        %1271 = vmatpush1.msra.mxu0 0.0
        %1272 = vmatprep.subr.mxu0 0.0
        %1273 = vmatpush1.msra.mxu0 0.0
        %1274 = vmatprep.subr.mxu0 0.0
        %1275 = vmatpush1.msra.mxu0 0.0
        %1276 = vmatprep.subr.mxu0 0.0
        %1277 = vmatpush1.msra.mxu0 0.0
        %1278 = vmatprep.subr.mxu0 0.0
        %1279 = vmatpush1.msra.mxu0 0.0
        %1280 = vmatprep.subr.mxu0 0.0
        %1281 = vmatpush1.msra.mxu0 0.0
        %1282 = vmatprep.subr.mxu0 0.0
        %1283 = vmatpush1.msra.mxu0 0.0
        %1284 = vmatprep.subr.mxu0 0.0
        %1285 = vmatpush1.msra.mxu0 0.0
        %1286 = vmatprep.subr.mxu0 0.0
        %1287 = vmatpush1.msra.mxu0 0.0
        %1288 = vmatprep.subr.mxu0 0.0
        %1289 = vmatpush1.msra.mxu0 0.0
        %1290 = vmatprep.subr.mxu0 0.0
        %1291 = vmatpush1.msra.mxu0 0.0
        %1292 = vmatprep.subr.mxu0 0.0
        %1293 = vmatpush1.msra.mxu0 0.0
        %1294 = vmatprep.subr.mxu0 0.0
        %1295 = vmatpush1.msra.mxu0 0.0
        %1296 = vmatprep.subr.mxu0 0.0
        %1297 = vmatpush1.msra.mxu0 0.0
        %1298 = vmatprep.subr.mxu0 0.0
        %1299 = vmatpush1.msra.mxu0 0.0
        %1300 = vmatprep.subr.mxu0 0.0
        %1301 = vmatpush1.msra.mxu0 0.0
        %1302 = vmatprep.subr.mxu0 0.0
        %1303 = vmatpush1.msra.mxu0 0.0
        %1304 = vmatprep.subr.mxu0 0.0
        %1305 = vmatpush1.msra.mxu0 0.0
        %1306 = vmatprep.subr.mxu0 0.0
        %1307 = vmatpush1.msra.mxu0 0.0
        %1308 = vmatprep.subr.mxu0 0.0
        %1309 = vmatpush1.msra.mxu0 0.0
        %1310 = vmatprep.subr.mxu0 0.0
        %1311 = vmatpush1.msra.mxu0 0.0
        %1312 = vmatprep.subr.mxu0 0.0
        %1313 = vmatpush1.msra.mxu0 0.0
        %1314 = vmatprep.subr.mxu0 0.0
        %1315 = vmatpush1.msra.mxu0 0.0
        %1316 = vmatprep.subr.mxu0 0.0
        %1317 = vmatpush1.msra.mxu0 0.0
        %1318 = vmatprep.subr.mxu0 0.0
        %1319 = vmatpush1.msra.mxu0 0.0
        %1320 = vmatprep.subr.mxu0 0.0
        %1321 = vmatpush1.msra.mxu0 0.0
        %1322 = vmatprep.subr.mxu0 0.0
        %1323 = vmatpush1.msra.mxu0 0.0
        %1324 = vmatprep.subr.mxu0 0.0
        %1325 = vmatpush1.msra.mxu0 0.0
        %1326 = vmatprep.subr.mxu0 0.0
        %1327 = vmatpush1.msra.mxu0 0.0
        %1328 = vmatprep.subr.mxu0 0.0
        %1329 = vmatpush1.msra.mxu0 0.0
        %1330 = vmatprep.mubr.f32.mxu0 0.0
        %1331 = vmatmul.mubr.f32.gmra.mrb[0].mxu0 %v1261
        %v1332 = vpop.f32.mrb[0].mxu0
        %v1333 = vadd.f32 0.0, %v1332
        %v1334 = vpop.f32.mrb[0].mxu0
        %1335 = vmatprep.mubr.f32.mxu0 0.0
        %1336 = vmatmul.mubr.f32.gmra.mrb[0].mxu0 %v1264
        %v1337 = vpop.f32.mrb[0].mxu0
        %v1338 = vadd.f32 0.0, %v1337
        %v1339 = vpop.f32.mrb[0].mxu0
        %1340 = vdwg.mxu0
        %v1342 = vsel %vm722, %v781, 0
        %v1345 = vsel %vm722, %v782, 0
        %1347 = vmatprep.subr.mxu0 0.0
        %1348 = vmatpush1.msra.mxu0 %v353
        %1349 = vmatprep.subr.mxu0 0.0
        %1350 = vmatpush1.msra.mxu0 %v354
        %1351 = vmatprep.subr.mxu0 0.0
        %1352 = vmatpush1.msra.mxu0 0.0
        %1353 = vmatprep.subr.mxu0 0.0
        %1354 = vmatpush1.msra.mxu0 0.0
        %1355 = vmatprep.subr.mxu0 0.0
        %1356 = vmatpush1.msra.mxu0 0.0
        %1357 = vmatprep.subr.mxu0 0.0
        %1358 = vmatpush1.msra.mxu0 0.0
        %1359 = vmatprep.subr.mxu0 0.0
        %1360 = vmatpush1.msra.mxu0 0.0
        %1361 = vmatprep.subr.mxu0 0.0
        %1362 = vmatpush1.msra.mxu0 0.0
        %1363 = vmatprep.subr.mxu0 0.0
        %1364 = vmatpush1.msra.mxu0 0.0
        %1365 = vmatprep.subr.mxu0 0.0
        %1366 = vmatpush1.msra.mxu0 0.0
        %1367 = vmatprep.subr.mxu0 0.0
        %1368 = vmatpush1.msra.mxu0 0.0
        %1369 = vmatprep.subr.mxu0 0.0
        %1370 = vmatpush1.msra.mxu0 0.0
        %1371 = vmatprep.subr.mxu0 0.0
        %1372 = vmatpush1.msra.mxu0 0.0
        %1373 = vmatprep.subr.mxu0 0.0
        %1374 = vmatpush1.msra.mxu0 0.0
        %1375 = vmatprep.subr.mxu0 0.0
        %1376 = vmatpush1.msra.mxu0 0.0
        %1377 = vmatprep.subr.mxu0 0.0
        %1378 = vmatpush1.msra.mxu0 0.0
        %1379 = vmatprep.subr.mxu0 0.0
        %1380 = vmatpush1.msra.mxu0 0.0
        %1381 = vmatprep.subr.mxu0 0.0
        %1382 = vmatpush1.msra.mxu0 0.0
        %1383 = vmatprep.subr.mxu0 0.0
        %1384 = vmatpush1.msra.mxu0 0.0
        %1385 = vmatprep.subr.mxu0 0.0
        %1386 = vmatpush1.msra.mxu0 0.0
        %1387 = vmatprep.subr.mxu0 0.0
        %1388 = vmatpush1.msra.mxu0 0.0
        %1389 = vmatprep.subr.mxu0 0.0
        %1390 = vmatpush1.msra.mxu0 0.0
        %1391 = vmatprep.subr.mxu0 0.0
        %1392 = vmatpush1.msra.mxu0 0.0
        %1393 = vmatprep.subr.mxu0 0.0
        %1394 = vmatpush1.msra.mxu0 0.0
        %1395 = vmatprep.subr.mxu0 0.0
        %1396 = vmatpush1.msra.mxu0 0.0
        %1397 = vmatprep.subr.mxu0 0.0
        %1398 = vmatpush1.msra.mxu0 0.0
        %1399 = vmatprep.subr.mxu0 0.0
        %1400 = vmatpush1.msra.mxu0 0.0
        %1401 = vmatprep.subr.mxu0 0.0
        %1402 = vmatpush1.msra.mxu0 0.0
        %1403 = vmatprep.subr.mxu0 0.0
        %1404 = vmatpush1.msra.mxu0 0.0
        %1405 = vmatprep.subr.mxu0 0.0
        %1406 = vmatpush1.msra.mxu0 0.0
        %1407 = vmatprep.subr.mxu0 0.0
        %1408 = vmatpush1.msra.mxu0 0.0
        %1409 = vmatprep.subr.mxu0 0.0
        %1410 = vmatpush1.msra.mxu0 0.0
        %1411 = vmatprep.mubr.f32.mxu0 0.0
        %1412 = vmatmul.mubr.f32.gmra.mrb[0].mxu0 %v1342
        %v1413 = vpop.f32.mrb[0].mxu0
        %v1414 = vadd.f32 0.0, %v1413
        %v1415 = vpop.f32.mrb[0].mxu0
        %1416 = vmatprep.mubr.f32.mxu0 0.0
        %1417 = vmatmul.mubr.f32.gmra.mrb[0].mxu0 %v1345
        %v1418 = vpop.f32.mrb[0].mxu0
        %v1419 = vadd.f32 0.0, %v1418
        %v1420 = vpop.f32.mrb[0].mxu0
        %1421 = vdwg.mxu0
        %v1423 = vsel %vm722, %v783, 0
        %v1426 = vsel %vm722, %v784, 0
        %1428 = vmatprep.subr.mxu0 0.0
        %1429 = vmatpush1.msra.mxu0 %v355
        %1430 = vmatprep.subr.mxu0 0.0
        %1431 = vmatpush1.msra.mxu0 %v356
        %1432 = vmatprep.subr.mxu0 0.0
        %1433 = vmatpush1.msra.mxu0 0.0
        %1434 = vmatprep.subr.mxu0 0.0
        %1435 = vmatpush1.msra.mxu0 0.0
        %1436 = vmatprep.subr.mxu0 0.0
        %1437 = vmatpush1.msra.mxu0 0.0
        %1438 = vmatprep.subr.mxu0 0.0
        %1439 = vmatpush1.msra.mxu0 0.0
        %1440 = vmatprep.subr.mxu0 0.0
        %1441 = vmatpush1.msra.mxu0 0.0
        %1442 = vmatprep.subr.mxu0 0.0
        %1443 = vmatpush1.msra.mxu0 0.0
        %1444 = vmatprep.subr.mxu0 0.0
        %1445 = vmatpush1.msra.mxu0 0.0
        %1446 = vmatprep.subr.mxu0 0.0
        %1447 = vmatpush1.msra.mxu0 0.0
        %1448 = vmatprep.subr.mxu0 0.0
        %1449 = vmatpush1.msra.mxu0 0.0
        %1450 = vmatprep.subr.mxu0 0.0
        %1451 = vmatpush1.msra.mxu0 0.0
        %1452 = vmatprep.subr.mxu0 0.0
        %1453 = vmatpush1.msra.mxu0 0.0
        %1454 = vmatprep.subr.mxu0 0.0
        %1455 = vmatpush1.msra.mxu0 0.0
        %1456 = vmatprep.subr.mxu0 0.0
        %1457 = vmatpush1.msra.mxu0 0.0
        %1458 = vmatprep.subr.mxu0 0.0
        %1459 = vmatpush1.msra.mxu0 0.0
        %1460 = vmatprep.subr.mxu0 0.0
        %1461 = vmatpush1.msra.mxu0 0.0
        %1462 = vmatprep.subr.mxu0 0.0
        %1463 = vmatpush1.msra.mxu0 0.0
        %1464 = vmatprep.subr.mxu0 0.0
        %1465 = vmatpush1.msra.mxu0 0.0
        %1466 = vmatprep.subr.mxu0 0.0
        %1467 = vmatpush1.msra.mxu0 0.0
        %1468 = vmatprep.subr.mxu0 0.0
        %1469 = vmatpush1.msra.mxu0 0.0
        %1470 = vmatprep.subr.mxu0 0.0
        %1471 = vmatpush1.msra.mxu0 0.0
        %1472 = vmatprep.subr.mxu0 0.0
        %1473 = vmatpush1.msra.mxu0 0.0
        %1474 = vmatprep.subr.mxu0 0.0
        %1475 = vmatpush1.msra.mxu0 0.0
        %1476 = vmatprep.subr.mxu0 0.0
        %1477 = vmatpush1.msra.mxu0 0.0
        %1478 = vmatprep.subr.mxu0 0.0
        %1479 = vmatpush1.msra.mxu0 0.0
        %1480 = vmatprep.subr.mxu0 0.0
        %1481 = vmatpush1.msra.mxu0 0.0
        %1482 = vmatprep.subr.mxu0 0.0
        %1483 = vmatpush1.msra.mxu0 0.0
        %1484 = vmatprep.subr.mxu0 0.0
        %1485 = vmatpush1.msra.mxu0 0.0
        %1486 = vmatprep.subr.mxu0 0.0
        %1487 = vmatpush1.msra.mxu0 0.0
        %1488 = vmatprep.subr.mxu0 0.0
        %1489 = vmatpush1.msra.mxu0 0.0
        %1490 = vmatprep.subr.mxu0 0.0
        %1491 = vmatpush1.msra.mxu0 0.0
        %1492 = vmatprep.mubr.f32.mxu0 0.0
        %1493 = vmatmul.mubr.f32.gmra.mrb[0].mxu0 %v1423
        %v1494 = vpop.f32.mrb[0].mxu0
        %v1495 = vadd.f32 0.0, %v1494
        %v1496 = vpop.f32.mrb[0].mxu0
        %1497 = vmatprep.mubr.f32.mxu0 0.0
        %1498 = vmatmul.mubr.f32.gmra.mrb[0].mxu0 %v1426
        %v1499 = vpop.f32.mrb[0].mxu0
        %v1500 = vadd.f32 0.0, %v1499
        %v1501 = vpop.f32.mrb[0].mxu0
        %1502 = vdwg.mxu0
        %v1504 = vsel %vm722, %v1171, 0
        %v1507 = vsel %vm722, %v1172, 0
        %1509 = vmatprep.subr.mxu0 0.0
        %1510 = vmatpush1.msra.mxu0 %v1252
        %1511 = vmatprep.subr.mxu0 0.0
        %1512 = vmatpush1.msra.mxu0 %v1257
        %1513 = vmatprep.subr.mxu0 0.0
        %1514 = vmatpush1.msra.mxu0 0.0
        %1515 = vmatprep.subr.mxu0 0.0
        %1516 = vmatpush1.msra.mxu0 0.0
        %1517 = vmatprep.subr.mxu0 0.0
        %1518 = vmatpush1.msra.mxu0 0.0
        %1519 = vmatprep.subr.mxu0 0.0
        %1520 = vmatpush1.msra.mxu0 0.0
        %1521 = vmatprep.subr.mxu0 0.0
        %1522 = vmatpush1.msra.mxu0 0.0
        %1523 = vmatprep.subr.mxu0 0.0
        %1524 = vmatpush1.msra.mxu0 0.0
        %1525 = vmatprep.subr.mxu0 0.0
        %1526 = vmatpush1.msra.mxu0 0.0
        %1527 = vmatprep.subr.mxu0 0.0
        %1528 = vmatpush1.msra.mxu0 0.0
        %1529 = vmatprep.subr.mxu0 0.0
        %1530 = vmatpush1.msra.mxu0 0.0
        %1531 = vmatprep.subr.mxu0 0.0
        %1532 = vmatpush1.msra.mxu0 0.0
        %1533 = vmatprep.subr.mxu0 0.0
        %1534 = vmatpush1.msra.mxu0 0.0
        %1535 = vmatprep.subr.mxu0 0.0
        %1536 = vmatpush1.msra.mxu0 0.0
        %1537 = vmatprep.subr.mxu0 0.0
        %1538 = vmatpush1.msra.mxu0 0.0
        %1539 = vmatprep.subr.mxu0 0.0
        %1540 = vmatpush1.msra.mxu0 0.0
        %1541 = vmatprep.subr.mxu0 0.0
        %1542 = vmatpush1.msra.mxu0 0.0
        %1543 = vmatprep.subr.mxu0 0.0
        %1544 = vmatpush1.msra.mxu0 0.0
        %1545 = vmatprep.subr.mxu0 0.0
        %1546 = vmatpush1.msra.mxu0 0.0
        %1547 = vmatprep.subr.mxu0 0.0
        %1548 = vmatpush1.msra.mxu0 0.0
        %1549 = vmatprep.subr.mxu0 0.0
        %1550 = vmatpush1.msra.mxu0 0.0
        %1551 = vmatprep.subr.mxu0 0.0
        %1552 = vmatpush1.msra.mxu0 0.0
        %1553 = vmatprep.subr.mxu0 0.0
        %1554 = vmatpush1.msra.mxu0 0.0
        %1555 = vmatprep.subr.mxu0 0.0
        %1556 = vmatpush1.msra.mxu0 0.0
        %1557 = vmatprep.subr.mxu0 0.0
        %1558 = vmatpush1.msra.mxu0 0.0
        %1559 = vmatprep.subr.mxu0 0.0
        %1560 = vmatpush1.msra.mxu0 0.0
        %1561 = vmatprep.subr.mxu0 0.0
        %1562 = vmatpush1.msra.mxu0 0.0
        %1563 = vmatprep.subr.mxu0 0.0
        %1564 = vmatpush1.msra.mxu0 0.0
        %1565 = vmatprep.subr.mxu0 0.0
        %1566 = vmatpush1.msra.mxu0 0.0
        %1567 = vmatprep.subr.mxu0 0.0
        %1568 = vmatpush1.msra.mxu0 0.0
        %1569 = vmatprep.subr.mxu0 0.0
        %1570 = vmatpush1.msra.mxu0 0.0
        %1571 = vmatprep.subr.mxu0 0.0
        %1572 = vmatpush1.msra.mxu0 0.0
        %1573 = vmatprep.mubr.f32.mxu0 0.0
        %1574 = vmatmul.mubr.f32.gmra.mrb[0].mxu0 %v1504
        %v1575 = vpop.f32.mrb[0].mxu0
        %v1576 = vadd.f32 0.0, %v1575
        %v1577 = vpop.f32.mrb[0].mxu0
        %1578 = vmatprep.mubr.f32.mxu0 0.0
        %1579 = vmatmul.mubr.f32.gmra.mrb[0].mxu0 %v1507
        %v1580 = vpop.f32.mrb[0].mxu0
        %v1581 = vadd.f32 0.0, %v1580
        %v1582 = vpop.f32.mrb[0].mxu0
        %1583 = vdwg.mxu0
        %v1585 = vsel %vm722, %v1173, 0
        %v1588 = vsel %vm722, %v1174, 0
        %1590 = vmatprep.subr.mxu0 0.0
        %1591 = vmatpush1.msra.mxu0 %v1333
        %1592 = vmatprep.subr.mxu0 0.0
        %1593 = vmatpush1.msra.mxu0 %v1338
        %1594 = vmatprep.subr.mxu0 0.0
        %1595 = vmatpush1.msra.mxu0 0.0
        %1596 = vmatprep.subr.mxu0 0.0
        %1597 = vmatpush1.msra.mxu0 0.0
        %1598 = vmatprep.subr.mxu0 0.0
        %1599 = vmatpush1.msra.mxu0 0.0
        %1600 = vmatprep.subr.mxu0 0.0
        %1601 = vmatpush1.msra.mxu0 0.0
        %1602 = vmatprep.subr.mxu0 0.0
        %1603 = vmatpush1.msra.mxu0 0.0
        %1604 = vmatprep.subr.mxu0 0.0
        %1605 = vmatpush1.msra.mxu0 0.0
        %1606 = vmatprep.subr.mxu0 0.0
        %1607 = vmatpush1.msra.mxu0 0.0
        %1608 = vmatprep.subr.mxu0 0.0
        %1609 = vmatpush1.msra.mxu0 0.0
        %1610 = vmatprep.subr.mxu0 0.0
        %1611 = vmatpush1.msra.mxu0 0.0
        %1612 = vmatprep.subr.mxu0 0.0
        %1613 = vmatpush1.msra.mxu0 0.0
        %1614 = vmatprep.subr.mxu0 0.0
        %1615 = vmatpush1.msra.mxu0 0.0
        %1616 = vmatprep.subr.mxu0 0.0
        %1617 = vmatpush1.msra.mxu0 0.0
        %1618 = vmatprep.subr.mxu0 0.0
        %1619 = vmatpush1.msra.mxu0 0.0
        %1620 = vmatprep.subr.mxu0 0.0
        %1621 = vmatpush1.msra.mxu0 0.0
        %1622 = vmatprep.subr.mxu0 0.0
        %1623 = vmatpush1.msra.mxu0 0.0
        %1624 = vmatprep.subr.mxu0 0.0
        %1625 = vmatpush1.msra.mxu0 0.0
        %1626 = vmatprep.subr.mxu0 0.0
        %1627 = vmatpush1.msra.mxu0 0.0
        %1628 = vmatprep.subr.mxu0 0.0
        %1629 = vmatpush1.msra.mxu0 0.0
        %1630 = vmatprep.subr.mxu0 0.0
        %1631 = vmatpush1.msra.mxu0 0.0
        %1632 = vmatprep.subr.mxu0 0.0
        %1633 = vmatpush1.msra.mxu0 0.0
        %1634 = vmatprep.subr.mxu0 0.0
        %1635 = vmatpush1.msra.mxu0 0.0
        %1636 = vmatprep.subr.mxu0 0.0
        %1637 = vmatpush1.msra.mxu0 0.0
        %1638 = vmatprep.subr.mxu0 0.0
        %1639 = vmatpush1.msra.mxu0 0.0
        %1640 = vmatprep.subr.mxu0 0.0
        %1641 = vmatpush1.msra.mxu0 0.0
        %1642 = vmatprep.subr.mxu0 0.0
        %1643 = vmatpush1.msra.mxu0 0.0
        %1644 = vmatprep.subr.mxu0 0.0
        %1645 = vmatpush1.msra.mxu0 0.0
        %1646 = vmatprep.subr.mxu0 0.0
        %1647 = vmatpush1.msra.mxu0 0.0
        %1648 = vmatprep.subr.mxu0 0.0
        %1649 = vmatpush1.msra.mxu0 0.0
        %1650 = vmatprep.subr.mxu0 0.0
        %1651 = vmatpush1.msra.mxu0 0.0
        %1652 = vmatprep.subr.mxu0 0.0
        %1653 = vmatpush1.msra.mxu0 0.0
        %1654 = vmatprep.mubr.f32.mxu0 0.0
        %1655 = vmatmul.mubr.f32.gmra.mrb[0].mxu0 %v1585
        %v1656 = vpop.f32.mrb[0].mxu0
        %v1657 = vadd.f32 0.0, %v1656
        %v1658 = vpop.f32.mrb[0].mxu0
        %1659 = vmatprep.mubr.f32.mxu0 0.0
        %1660 = vmatmul.mubr.f32.gmra.mrb[0].mxu0 %v1588
        %v1661 = vpop.f32.mrb[0].mxu0
        %v1662 = vadd.f32 0.0, %v1661
        %v1663 = vpop.f32.mrb[0].mxu0
        %1664 = vdwg.mxu0
        %v1666 = vsel %vm722, %v1175, 0
        %v1669 = vsel %vm722, %v1176, 0
        %1671 = vmatprep.subr.mxu0 0.0
        %1672 = vmatpush1.msra.mxu0 %v1414
        %1673 = vmatprep.subr.mxu0 0.0
        %1674 = vmatpush1.msra.mxu0 %v1419
        %1675 = vmatprep.subr.mxu0 0.0
        %1676 = vmatpush1.msra.mxu0 0.0
        %1677 = vmatprep.subr.mxu0 0.0
        %1678 = vmatpush1.msra.mxu0 0.0
        %1679 = vmatprep.subr.mxu0 0.0
        %1680 = vmatpush1.msra.mxu0 0.0
        %1681 = vmatprep.subr.mxu0 0.0
        %1682 = vmatpush1.msra.mxu0 0.0
        %1683 = vmatprep.subr.mxu0 0.0
        %1684 = vmatpush1.msra.mxu0 0.0
        %1685 = vmatprep.subr.mxu0 0.0
        %1686 = vmatpush1.msra.mxu0 0.0
        %1687 = vmatprep.subr.mxu0 0.0
        %1688 = vmatpush1.msra.mxu0 0.0
        %1689 = vmatprep.subr.mxu0 0.0
        %1690 = vmatpush1.msra.mxu0 0.0
        %1691 = vmatprep.subr.mxu0 0.0
        %1692 = vmatpush1.msra.mxu0 0.0
        %1693 = vmatprep.subr.mxu0 0.0
        %1694 = vmatpush1.msra.mxu0 0.0
        %1695 = vmatprep.subr.mxu0 0.0
        %1696 = vmatpush1.msra.mxu0 0.0
        %1697 = vmatprep.subr.mxu0 0.0
        %1698 = vmatpush1.msra.mxu0 0.0
        %1699 = vmatprep.subr.mxu0 0.0
        %1700 = vmatpush1.msra.mxu0 0.0
        %1701 = vmatprep.subr.mxu0 0.0
        %1702 = vmatpush1.msra.mxu0 0.0
        %1703 = vmatprep.subr.mxu0 0.0
        %1704 = vmatpush1.msra.mxu0 0.0
        %1705 = vmatprep.subr.mxu0 0.0
        %1706 = vmatpush1.msra.mxu0 0.0
        %1707 = vmatprep.subr.mxu0 0.0
        %1708 = vmatpush1.msra.mxu0 0.0
        %1709 = vmatprep.subr.mxu0 0.0
        %1710 = vmatpush1.msra.mxu0 0.0
        %1711 = vmatprep.subr.mxu0 0.0
        %1712 = vmatpush1.msra.mxu0 0.0
        %1713 = vmatprep.subr.mxu0 0.0
        %1714 = vmatpush1.msra.mxu0 0.0
        %1715 = vmatprep.subr.mxu0 0.0
        %1716 = vmatpush1.msra.mxu0 0.0
        %1717 = vmatprep.subr.mxu0 0.0
        %1718 = vmatpush1.msra.mxu0 0.0
        %1719 = vmatprep.subr.mxu0 0.0
        %1720 = vmatpush1.msra.mxu0 0.0
        %1721 = vmatprep.subr.mxu0 0.0
        %1722 = vmatpush1.msra.mxu0 0.0
        %1723 = vmatprep.subr.mxu0 0.0
        %1724 = vmatpush1.msra.mxu0 0.0
        %1725 = vmatprep.subr.mxu0 0.0
        %1726 = vmatpush1.msra.mxu0 0.0
        %1727 = vmatprep.subr.mxu0 0.0
        %1728 = vmatpush1.msra.mxu0 0.0
        %1729 = vmatprep.subr.mxu0 0.0
        %1730 = vmatpush1.msra.mxu0 0.0
        %1731 = vmatprep.subr.mxu0 0.0
        %1732 = vmatpush1.msra.mxu0 0.0
        %1733 = vmatprep.subr.mxu0 0.0
        %1734 = vmatpush1.msra.mxu0 0.0
        %1735 = vmatprep.mubr.f32.mxu0 0.0
        %1736 = vmatmul.mubr.f32.gmra.mrb[0].mxu0 %v1666
        %v1737 = vpop.f32.mrb[0].mxu0
        %v1738 = vadd.f32 0.0, %v1737
        %v1739 = vpop.f32.mrb[0].mxu0
        %1740 = vmatprep.mubr.f32.mxu0 0.0
        %1741 = vmatmul.mubr.f32.gmra.mrb[0].mxu0 %v1669
        %v1742 = vpop.f32.mrb[0].mxu0
        %v1743 = vadd.f32 0.0, %v1742
        %v1744 = vpop.f32.mrb[0].mxu0
        %1745 = vdwg.mxu0
        %v1747 = vsel %vm722, %v1177, 0
        %v1750 = vsel %vm722, %v1178, 0
        %1752 = vmatprep.subr.mxu0 0.0
        %1753 = vmatpush1.msra.mxu0 %v1495
        %1754 = vmatprep.subr.mxu0 0.0
        %1755 = vmatpush1.msra.mxu0 %v1500
        %1756 = vmatprep.subr.mxu0 0.0
        %1757 = vmatpush1.msra.mxu0 0.0
        %1758 = vmatprep.subr.mxu0 0.0
        %1759 = vmatpush1.msra.mxu0 0.0
        %1760 = vmatprep.subr.mxu0 0.0
        %1761 = vmatpush1.msra.mxu0 0.0
        %1762 = vmatprep.subr.mxu0 0.0
        %1763 = vmatpush1.msra.mxu0 0.0
        %1764 = vmatprep.subr.mxu0 0.0
        %1765 = vmatpush1.msra.mxu0 0.0
        %1766 = vmatprep.subr.mxu0 0.0
        %1767 = vmatpush1.msra.mxu0 0.0
        %1768 = vmatprep.subr.mxu0 0.0
        %1769 = vmatpush1.msra.mxu0 0.0
        %1770 = vmatprep.subr.mxu0 0.0
        %1771 = vmatpush1.msra.mxu0 0.0
        %1772 = vmatprep.subr.mxu0 0.0
        %1773 = vmatpush1.msra.mxu0 0.0
        %1774 = vmatprep.subr.mxu0 0.0
        %1775 = vmatpush1.msra.mxu0 0.0
        %1776 = vmatprep.subr.mxu0 0.0
        %1777 = vmatpush1.msra.mxu0 0.0
        %1778 = vmatprep.subr.mxu0 0.0
        %1779 = vmatpush1.msra.mxu0 0.0
        %1780 = vmatprep.subr.mxu0 0.0
        %1781 = vmatpush1.msra.mxu0 0.0
        %1782 = vmatprep.subr.mxu0 0.0
        %1783 = vmatpush1.msra.mxu0 0.0
        %1784 = vmatprep.subr.mxu0 0.0
        %1785 = vmatpush1.msra.mxu0 0.0
        %1786 = vmatprep.subr.mxu0 0.0
        %1787 = vmatpush1.msra.mxu0 0.0
        %1788 = vmatprep.subr.mxu0 0.0
        %1789 = vmatpush1.msra.mxu0 0.0
        %1790 = vmatprep.subr.mxu0 0.0
        %1791 = vmatpush1.msra.mxu0 0.0
        %1792 = vmatprep.subr.mxu0 0.0
        %1793 = vmatpush1.msra.mxu0 0.0
        %1794 = vmatprep.subr.mxu0 0.0
        %1795 = vmatpush1.msra.mxu0 0.0
        %1796 = vmatprep.subr.mxu0 0.0
        %1797 = vmatpush1.msra.mxu0 0.0
        %1798 = vmatprep.subr.mxu0 0.0
        %1799 = vmatpush1.msra.mxu0 0.0
        %1800 = vmatprep.subr.mxu0 0.0
        %1801 = vmatpush1.msra.mxu0 0.0
        %1802 = vmatprep.subr.mxu0 0.0
        %1803 = vmatpush1.msra.mxu0 0.0
        %1804 = vmatprep.subr.mxu0 0.0
        %1805 = vmatpush1.msra.mxu0 0.0
        %1806 = vmatprep.subr.mxu0 0.0
        %1807 = vmatpush1.msra.mxu0 0.0
        %1808 = vmatprep.subr.mxu0 0.0
        %1809 = vmatpush1.msra.mxu0 0.0
        %1810 = vmatprep.subr.mxu0 0.0
        %1811 = vmatpush1.msra.mxu0 0.0
        %1812 = vmatprep.subr.mxu0 0.0
        %1813 = vmatpush1.msra.mxu0 0.0
        %1814 = vmatprep.subr.mxu0 0.0
        %1815 = vmatpush1.msra.mxu0 0.0
        %1816 = vmatprep.mubr.f32.mxu0 0.0
        %1817 = vmatmul.mubr.f32.gmra.mrb[0].mxu0 %v1747
        %v1818 = vpop.f32.mrb[0].mxu0
        %v1819 = vadd.f32 0.0, %v1818
        %v1820 = vpop.f32.mrb[0].mxu0
        %1821 = vmatprep.mubr.f32.mxu0 0.0
        %1822 = vmatmul.mubr.f32.gmra.mrb[0].mxu0 %v1750
        %v1823 = vpop.f32.mrb[0].mxu0
        %v1824 = vadd.f32 0.0, %v1823
        %v1825 = vpop.f32.mrb[0].mxu0
        %1826 = vdwg.mxu0
        %1827 = vst.msk [vmem:[%s332] sm:$0xff] %vm365, %v1576
        %1828 = vst.msk [vmem:[%s332 + $0x8] sm:$0xff] %vm365, %v1581
        %1829 = vst.msk [vmem:[%s332 + $0x10] sm:$0xff] %vm365, %v1657
        %1830 = vst.msk [vmem:[%s332 + $0x18] sm:$0xff] %vm365, %v1662
        %1831 = vst.msk [vmem:[%s332 + $0x20] sm:$0xff] %vm365, %v1738
        %1832 = vst.msk [vmem:[%s332 + $0x28] sm:$0xff] %vm365, %v1743
        %1833 = vst.msk [vmem:[%s332 + $0x30] sm:$0xff] %vm365, %v1819
        %1834 = vst.msk [vmem:[%s332 + $0x38] sm:$0xff] %vm365, %v1824
        %s1835 = sand.u32 %s139, 1
        %s1836 = scalar_lea.sflag [#allocation4], %s1835
        %s1837 = sand.u32 %s139, 1
        %s1838 = smul.addr %s1837, 64
        %s1839 = scalar_lea.vmem [#allocation10], %s1838
        // Predicated region
        $region53: #{tpu_custom_call.1} parent=35 // pred_check
          %p1840 = pneg %p149
        $region54: #{tpu_custom_call.1} parent=35 // pred_check_branch
          %1842 = sbr.rel (%p1840) target = $region56
        $region55: #{tpu_custom_call.1} parent=35 // pred_region
          %s1844 = ssub.s32 1024, 1024
          %1845 = vsyncadd %s1836, %s1844
          %s1846 = smul.addr %s27, 8
          %s1847 = smul.addr %s1846, 128
          %s1848 = scalar_lea.hbm %s4, %s1847
          %s1849 = sshll.u32 %s1839, 4
          %s1850 = int_to_ptr.vmem [resolvable:$true] %s1849
          %1855 = dma.vmem_to_hbm [thread:$0]  %s1850, 1024, %s1848, %s1836, 128, 128, 8
        $region56: #{tpu_custom_call.1} parent=35 // pred_fallthru
          _
      $region36: #{tpu_custom_call.1} parent=5 // pred_fallthru
        _
      %p1856 = scmp.le.s32.totalorder 2, %s22
      // Predicated region
      $region57: #{tpu_custom_call.1} parent=5 // pred_check
        %p1857 = pneg %p1856
      $region58: #{tpu_custom_call.1} parent=5 // pred_check_branch
        %1859 = sbr.rel (%p1857) target = $region60
      $region59: #{tpu_custom_call.1} parent=5 // pred_region
        %s1860 = ssub.s32 %s22, 2
        // Predicated region
        $region61: #{tpu_custom_call.1} parent=59 // pred_check
          %p1861 = pneg %p155
        $region62: #{tpu_custom_call.1} parent=59 // pred_check_branch
          %1863 = sbr.rel (%p1861) target = $region64
        $region63: #{tpu_custom_call.1} parent=59 // pred_region
          %s1864 = sand.u32 %s140, 1
          %s1865 = scalar_lea.sflag [#allocation4], %s1864
          %s1866 = sand.u32 %s140, 1
          %s1867 = smul.addr %s1866, 64
          %s1868 = scalar_lea.vmem [#allocation10], %s1867
          %1869 = dma.done %s1865, 1024
        $region64: #{tpu_custom_call.1} parent=59 // pred_fallthru
          _
      $region60: #{tpu_custom_call.1} parent=5 // pred_fallthru
        _
    $region6: #{tpu_custom_call.1} parent=1 // loop_footer
      %s26 = sadd.s32 1, %s22
    $region7: #{tpu_custom_call.1} parent=1 // loop_footer_branch
      %21 = sbr.rel target = $region3
    $region8: #{tpu_custom_call.1} parent=1 // loop_exit
      _
    %1870 = vsyncpa [#allocation3], 1
    %s1871 = scalar_lea.sflag [#allocation3], 1
    %1872 = vsyncpa %s1871, 1
    %1873 = vsyncpa [#allocation6], 1
    %s1874 = scalar_lea.sflag [#allocation6], 1
    %1875 = vsyncpa %s1874, 1
    %1876 = vsyncpa [#allocation9], 1
    %s1877 = scalar_lea.sflag [#allocation9], 1
    %1878 = vsyncpa %s1877, 1
    %1879 = vsyncpa [#allocation4], 1
    %s1880 = scalar_lea.sflag [#allocation4], 1
    %1881 = vsyncpa %s1880, 1

</llo_original>
